<compile_context>
chip_gen: v6e
topology: v6e:2x2x1
jax: 0.10.0
libtpu: 0.0.40
codegen_flags: <defaults>
</compile_context>

<pallas_src>
import functools

import jax
import jax.numpy as jnp
from jax.experimental import pallas as pl
from jax.experimental.pallas import tpu as pltpu

_BN_EPS = 1e-5
_NEG = -1e30
_MM_DTYPE = jnp.bfloat16          # MXU-native operand dtype (f32 accumulation)


@functools.lru_cache(maxsize=None)
def _vmem_limit_bytes():
    # Per-generation scoped VMEM limit: v7x has 64 MiB physical (stay <= ~48),
    # v5e/v6e have 128 MiB (allow large tiles / deeper buffering).
    try:
        kind = jax.devices()[0].device_kind.lower()
    except Exception:
        return 32 * 1024 * 1024
    if "v7" in kind or "7x" in kind:
        return 48 * 1024 * 1024
    if "v5" in kind or "v6" in kind:
        return 100 * 1024 * 1024
    return 32 * 1024 * 1024


# ----------------------------- in-kernel math -------------------------------
def _erf(x):
    # Abramowitz & Stegun 7.1.26 (max abs error ~1.5e-7); the divide goes to
    # the EUP via pl.reciprocal.
    a1, a2, a3, a4, a5 = 0.254829592, -0.284496736, 1.421413741, -1.453152027, 1.061405429
    p = 0.3275911
    sgn = jnp.where(x >= 0.0, 1.0, -1.0)
    ax = jnp.abs(x)
    t = pl.reciprocal(1.0 + p * ax, approx=True)
    poly = ((((a5 * t + a4) * t + a3) * t + a2) * t + a1) * t
    return sgn * (1.0 - poly * jnp.exp(-ax * ax))


def _gelu(x):
    # erf-based GELU, matching nn.GELU(approximate='none') / F.gelu
    return 0.5 * x * (1.0 + _erf(x * 0.7071067811865476))


def _bn_rows(z, gamma_row, beta_row):
    # BatchNorm1d (training mode) over the row (batch*token) dimension.
    # Single pass: sum and sum-of-squares together; folded scale/shift.
    inv_r = 1.0 / z.shape[0]
    s1 = jnp.sum(z, axis=0, keepdims=True)
    s2 = jnp.sum(z * z, axis=0, keepdims=True)
    mu = s1 * inv_r
    var = s2 * inv_r - mu * mu
    a = jax.lax.rsqrt(var + _BN_EPS) * gamma_row
    b = beta_row - mu * a
    return z * a + b


def _mm(act, w_bf16):
    # linear-layer matmul: bf16 operands (weights pre-cast at init), f32 accum.
    return jnp.dot(act.astype(_MM_DTYPE), w_bf16,
                   preferred_element_type=jnp.float32)


# ------------------- kernel 1: fused patch embedding + pose -----------------
def _embed_kernel(*refs, widths, gelu_flags, B, N):
    tok_ref, pose_ref = refs[0], refs[1]
    w_refs = refs[2:8]                                   # 6 bf16 weight matrices
    vec_ref = refs[8]                                    # (18, C) f32: [b,g,be] x 6
    o_ref = refs[9]

    h = tok_ref[...]                                     # (B*N, Fin) f32
    for s, (cout, apply_gelu) in enumerate(zip(widths, gelu_flags)):
        b = vec_ref[3 * s: 3 * s + 1, :cout]
        g = vec_ref[3 * s + 1: 3 * s + 2, :cout]
        be = vec_ref[3 * s + 2: 3 * s + 3, :cout]
        z = _bn_rows(_mm(h, w_refs[s][...]) + b, g, be)
        h = _gelu(z) if apply_gelu else z                # last stage: no GELU
    C = widths[-1]
    o_ref[...] = h.reshape(B, N, C) + pose_ref[...][None]   # + pose_embedding


# --------------------- kernel 2: fully fused ViG block ----------------------
def _vig_block_kernel(x_ref, wcc_ref, wch_ref, whc_ref, vc_ref, vh_ref, o_ref,
                      *, B, N, C, k, unroll):
    x = x_ref[...]                                       # (B, N, C) f32
    rows0 = x.reshape(B * N, C)

    def vrow(ref, i):                                    # (1, width) f32
        return ref[i:i + 1, :]

    def two_layer_cc(h, wi1, wi2, voff, pre_gelu):
        # TwoLayerNN with (C,C) weights: [pre-GELU] -> Lin -> BN -> GELU -> Lin -> +res
        b1, g, be, b2 = (vrow(vc_ref, voff + j) for j in range(4))
        hh = _gelu(h) if pre_gelu else h
        z = _bn_rows(_mm(hh, wcc_ref[wi1]) + b1, g, be)
        return _mm(_gelu(z), wcc_ref[wi2]) + b2 + hh

    def two_layer_ch(h, wi, voff_h, b2_off, pre_gelu):
        # TwoLayerNN with (C,4C)/(4C,C) weights (FFN layers)
        b1, g, be = (vrow(vh_ref, voff_h + j) for j in range(3))
        b2 = vrow(vc_ref, b2_off)
        hh = _gelu(h) if pre_gelu else h
        z = _bn_rows(_mm(hh, wch_ref[wi]) + b1, g, be)
        return _mm(_gelu(z), whc_ref[wi]) + b2 + hh

    # in_layer1 (TwoLayerNN, residual inside)
    x1_rows = two_layer_cc(rows0, 0, 1, 0, pre_gelu=False)
    x1 = x1_rows.reshape(B, N, C)
    x1_bf = x1.astype(_MM_DTYPE)                         # hoisted: cast once

    # graph step: sim[b,i,j] = <x_i, x_j>; in-kernel contraction, no xT input.
    # (kept f32 so the top-k ordering matches the f32 reference)
    sim = jax.lax.dot_general(x, x, (((2,), (2,)), ((0,), (0,))),
                              preferred_element_type=jnp.float32)   # (B,N,N)

    lane = jax.lax.broadcasted_iota(jnp.int32, (B, N, N), 2)

    def topk_body(_, carry):
        work, best = carry
        rowmax = jnp.max(work, axis=-1, keepdims=True)
        cand = jnp.where(work == rowmax, lane, N)        # tie-break: lowest index
        idx = jnp.min(cand, axis=-1, keepdims=True)
        onehot = lane == idx                             # exactly one-hot per row
        # gather = onehot @ x1  (bf16 operands: onehot is exactly {0,1})
        gathered = jax.lax.dot_general(onehot.astype(_MM_DTYPE), x1_bf,
                                       (((2,), (1,)), ((0,), (0,))),
                                       preferred_element_type=jnp.float32)
        best = jnp.maximum(best, gathered)
        work = jnp.where(onehot, _NEG, work)
        return work, best

    init = (sim, jnp.full((B, N, C), _NEG, dtype=jnp.float32))
    _, maxneib = jax.lax.fori_loop(0, k, topk_body, init, unroll=unroll)
    agg_rows = (maxneib - x1).reshape(B * N, C)          # max_j(x_j) - x_i

    # multi_head_fc (Conv1d(2C, C, 1)) as two matmuls on pre-split halves
    fc_rows = _mm(x1_rows, wcc_ref[4]) + _mm(agg_rows, wcc_ref[5]) + vrow(vc_ref, 8)

    # out_layer1 (pre-GELU TwoLayerNN) + block shortcut
    y_rows = two_layer_cc(fc_rows, 2, 3, 4, pre_gelu=True)
    x2_rows = y_rows + rows0

    # FFN: in_layer2 / out_layer2 + residual
    t = two_layer_ch(x2_rows, 0, 0, 9, pre_gelu=False)
    t = two_layer_ch(t, 1, 3, 10, pre_gelu=True)
    o_ref[...] = (t + x2_rows).reshape(B, N, C)


# ------------------------------ pallas wrappers ------------------------------
def _full_spec(a):
    nd = a.ndim
    return pl.BlockSpec(a.shape, lambda i, nd=nd: (0,) * nd)


def embed_forward(tokens, ep, pose, *, B, N):
    C = ep["widths"][-1]
    args = [tokens, pose] + list(ep["ws"]) + [ep["vecs"]]
    kern = functools.partial(_embed_kernel, widths=ep["widths"],
                             gelu_flags=ep["gelu"], B=B, N=N)
    return pl.pallas_call(
        kern,
        out_shape=jax.ShapeDtypeStruct((B, N, C), jnp.float32),
        grid=(1,),
        in_specs=[_full_spec(a) for a in args],
        out_specs=pl.BlockSpec((B, N, C), lambda i: (0, 0, 0)),
        compiler_params=pltpu.CompilerParams(vmem_limit_bytes=_vmem_limit_bytes()),
    )(*args)


def vig_block_forward(x, bp, *, k):
    B, N, C = x.shape
    args = [x, bp["wcc"], bp["wch"], bp["whc"], bp["vec_c"], bp["vec_h"]]
    # unroll top-k only while the (work,best) carry stays small (review item)
    carry_bytes = 4 * B * N * (N + C)
    kern = functools.partial(_vig_block_kernel, B=B, N=N, C=C, k=k,
                             unroll=carry_bytes <= (2 << 20))
    return pl.pallas_call(
        kern,
        out_shape=jax.ShapeDtypeStruct((B, N, C), jnp.float32),
        grid=(1,),
        in_specs=[_full_spec(a) for a in args],
        out_specs=pl.BlockSpec((B, N, C), lambda i: (0, 0, 0)),
        compiler_params=pltpu.CompilerParams(vmem_limit_bytes=_vmem_limit_bytes()),
    )(*args)


# ------------------------------- model glue ---------------------------------
def simple_patchifier(x, patch):
    """Exactly the PyTorch SimplePatchifier: (B,C,H,W) -> (B, N, C, p, p)."""
    B, C, H, W = x.shape
    nH, nW = H // patch, W // patch
    xp = jnp.transpose(x, (0, 2, 3, 1))                 # B, H, W, C
    xp = xp.reshape(B, nH, patch, nW, patch, C)         # B, nH, ph, nW, pw, C
    xp = jnp.transpose(xp, (0, 1, 3, 5, 2, 4))          # B, nH, nW, C, ph, pw
    return xp.reshape(B, nH * nW, C, patch, patch)
    # NOTE: pure data-layout (permute/unfold); no compute, so it stays as
    # reshape/transpose glue feeding the fused Pallas kernels.


def vgnn_forward(x_img, params, *, patch, k):
    patches = simple_patchifier(x_img, patch)           # (B, N, C, p, p)
    B, N, Cimg, ph, pw = patches.shape
    tokens = patches.reshape(B * N, Cimg * ph * pw)     # channel-major per patch
    x = embed_forward(tokens, params["embed"], params["pose"], B=B, N=N)
    for bp in params["blocks"]:
        x = vig_block_forward(x, bp, k=k)
    return x


# --------------------------- deterministic params ---------------------------
def init_params(key, *, in_features, out_feature, num_patches, num_blocks):
    kit = iter(jax.random.split(key, 1024))

    def nrm(shape, s=0.05):
        return s * jax.random.normal(next(kit), shape, dtype=jnp.float32)

    C = out_feature
    dims = [in_features, C // 2, C // 4, C // 8, C // 4, C // 2, C]

    def padded(v):                                       # pad small vecs to width C
        return jnp.pad(v, (0, C - v.shape[0]))

    emb_ws, emb_rows = [], []
    for i in range(6):
        cin, cout = dims[i], dims[i + 1]
        emb_ws.append(nrm((cin, cout)).astype(_MM_DTYPE))
        emb_rows += [padded(nrm((cout,))),               # bias
                     padded(1.0 + nrm((cout,))),         # gamma
                     padded(nrm((cout,)))]               # beta
    embed = dict(ws=emb_ws, vecs=jnp.stack(emb_rows),    # (18, C) f32 slab
                 widths=tuple(dims[1:]),
                 gelu=tuple(i < 5 for i in range(6)))    # last stage: Linear+BN only

    pose = jax.random.uniform(next(kit), (num_patches, C), dtype=jnp.float32)

    def two_layer(cin, hid):
        return dict(w1=nrm((cin, hid)), b1=nrm((hid,)), g=1.0 + nrm((hid,)),
                    be=nrm((hid,)), w2=nrm((hid, cin)), b2=nrm((cin,)))

    blocks = []
    for _ in range(num_blocks):
        in1, out1 = two_layer(C, C), two_layer(C, C)
        in2, out2 = two_layer(C, 4 * C), two_layer(C, 4 * C)
        # Conv1d(2C, C, 1) weight acting on the channel-interleaved stack of
        # [x1, agg]: even input channels see x1, odd input channels see agg.
        w_fc = nrm((C, 2 * C))
        fc_wa, fc_wb = w_fc[:, 0::2].T, w_fc[:, 1::2].T   # each (C, C)
        fc_b = nrm((C,))
        blocks.append(dict(
            # packed bf16 weights: fewer, bigger DMAs + half the bytes
            wcc=jnp.stack([in1["w1"], in1["w2"], out1["w1"], out1["w2"],
                           fc_wa, fc_wb]).astype(_MM_DTYPE),       # (6, C, C)
            wch=jnp.stack([in2["w1"], out2["w1"]]).astype(_MM_DTYPE),   # (2, C, 4C)
            whc=jnp.stack([in2["w2"], out2["w2"]]).astype(_MM_DTYPE),   # (2, 4C, C)
            # packed f32 vectors
            vec_c=jnp.stack([in1["b1"], in1["g"], in1["be"], in1["b2"],
                             out1["b1"], out1["g"], out1["be"], out1["b2"],
                             fc_b, in2["b2"], out2["b2"]]),        # (11, C)
            vec_h=jnp.stack([in2["b1"], in2["g"], in2["be"],
                             out2["b1"], out2["g"], out2["be"]]),  # (6, 4C)
        ))
    return dict(embed=embed, pose=pose, blocks=blocks)


# ----------------------------------- main ------------------------------------
if __name__ == "__main__":
    B, C_img, H, W = 2, 3, 16, 16
    patch = 4
    out_feature = 128                                   # multiple of 128 -> lane-dense
    num_patches = (H // patch) * (W // patch)           # 16
    in_features = C_img * patch * patch                 # 48
    num_vig_blocks = 2
    num_edges = 4

    key = jax.random.PRNGKey(0)
    kx, kp = jax.random.split(key)
    x_img = jax.random.normal(kx, (B, C_img, H, W), dtype=jnp.float32)
    params = init_params(kp, in_features=in_features, out_feature=out_feature,
                         num_patches=num_patches, num_blocks=num_vig_blocks)

    # SimplePatchifier spec check
    patches = simple_patchifier(x_img, patch)
    assert patches.shape == (B, num_patches, C_img, patch, patch), patches.shape

    out = vgnn_forward(x_img, params, patch=patch, k=num_edges)
    out = jax.block_until_ready(out)

    assert out.shape == (B, num_patches, out_feature), out.shape
    assert bool(jnp.all(jnp.isfinite(out)))
    print("KERNEL_OK")
</pallas_src>

<mosaic_0001>
module attributes {stable_mosaic.version = 11 : i64} {
  func.func @_embed_kernel(%arg0: i32, %arg1: memref<32x48xf32, #tpu.memory_space<vmem>>, %arg2: memref<16x128xf32, #tpu.memory_space<vmem>>, %arg3: memref<48x64xbf16, #tpu.memory_space<vmem>>, %arg4: memref<64x32xbf16, #tpu.memory_space<vmem>>, %arg5: memref<32x16xbf16, #tpu.memory_space<vmem>>, %arg6: memref<16x32xbf16, #tpu.memory_space<vmem>>, %arg7: memref<32x64xbf16, #tpu.memory_space<vmem>>, %arg8: memref<64x128xbf16, #tpu.memory_space<vmem>>, %arg9: memref<18x128xf32, #tpu.memory_space<vmem>>, %arg10: memref<2x16x128xf32, #tpu.memory_space<vmem>>) attributes {dimension_semantics = [#tpu.dimension_semantics<arbitrary>], iteration_bounds = array<i64: 1>, scalar_prefetch = 0 : i64, scratch_operands = 0 : i64, tpu.core_type = #tpu.core_type<tc>, window_params = [{pipeline_mode = #tpu.pipeline_mode<synchronous>, transform_indices = @transform_0, window_bounds = array<i64: 32, 48>}, {pipeline_mode = #tpu.pipeline_mode<synchronous>, transform_indices = @transform_1, window_bounds = array<i64: 16, 128>}, {pipeline_mode = #tpu.pipeline_mode<synchronous>, transform_indices = @transform_2, window_bounds = array<i64: 48, 64>}, {pipeline_mode = #tpu.pipeline_mode<synchronous>, transform_indices = @transform_3, window_bounds = array<i64: 64, 32>}, {pipeline_mode = #tpu.pipeline_mode<synchronous>, transform_indices = @transform_4, window_bounds = array<i64: 32, 16>}, {pipeline_mode = #tpu.pipeline_mode<synchronous>, transform_indices = @transform_5, window_bounds = array<i64: 16, 32>}, {pipeline_mode = #tpu.pipeline_mode<synchronous>, transform_indices = @transform_6, window_bounds = array<i64: 32, 64>}, {pipeline_mode = #tpu.pipeline_mode<synchronous>, transform_indices = @transform_7, window_bounds = array<i64: 64, 128>}, {pipeline_mode = #tpu.pipeline_mode<synchronous>, transform_indices = @transform_8, window_bounds = array<i64: 18, 128>}, {pipeline_mode = #tpu.pipeline_mode<synchronous>, transform_indices = @transform_9, window_bounds = array<i64: 2, 16, 128>}]} {
    %c0 = arith.constant 0 : index
    %c0_0 = arith.constant 0 : index
    %0 = vector.load %arg1[%c0, %c0_0] : memref<32x48xf32, #tpu.memory_space<vmem>>, vector<32x48xf32>
    %c0_1 = arith.constant 0 : index
    %c0_2 = arith.constant 0 : index
    %1 = vector.load %arg9[%c0_1, %c0_2] : memref<18x128xf32, #tpu.memory_space<vmem>>, vector<1x64xf32>
    %c1 = arith.constant 1 : index
    %c0_3 = arith.constant 0 : index
    %2 = vector.load %arg9[%c1, %c0_3] : memref<18x128xf32, #tpu.memory_space<vmem>>, vector<1x64xf32>
    %c2 = arith.constant 2 : index
    %c0_4 = arith.constant 0 : index
    %3 = vector.load %arg9[%c2, %c0_4] : memref<18x128xf32, #tpu.memory_space<vmem>>, vector<1x64xf32>
    %c0_5 = arith.constant 0 : index
    %c0_6 = arith.constant 0 : index
    %4 = vector.load %arg3[%c0_5, %c0_6] : memref<48x64xbf16, #tpu.memory_space<vmem>>, vector<48x64xbf16>
    %5 = arith.truncf %0 : vector<32x48xf32> to vector<32x48xbf16>
    %cst = arith.constant dense<0.000000e+00> : vector<32x64xf32>
    %6 = tpu.matmul %5, %4, %cst {dimension_numbers = #tpu.dot_dimension_numbers<[1], [0], [0], [1], [0, 0, 1, 1], [], []>} : vector<32x48xbf16>, vector<48x64xbf16>, vector<32x64xf32> -> vector<32x64xf32>
    %7 = vector.broadcast %1 : vector<1x64xf32> to vector<32x64xf32>
    %8 = arith.addf %6, %7 : vector<32x64xf32>
    %cst_7 = arith.constant dense<0.000000e+00> : vector<64xf32>
    %9 = vector.multi_reduction <add>, %8, %cst_7 [0] : vector<32x64xf32> to vector<64xf32>
    %10 = vector.shape_cast %9 : vector<64xf32> to vector<1x64xf32>
    %11 = arith.mulf %8, %8 : vector<32x64xf32>
    %cst_8 = arith.constant dense<0.000000e+00> : vector<64xf32>
    %12 = vector.multi_reduction <add>, %11, %cst_8 [0] : vector<32x64xf32> to vector<64xf32>
    %13 = vector.shape_cast %12 : vector<64xf32> to vector<1x64xf32>
    %cst_9 = arith.constant 3.125000e-02 : f32
    %14 = vector.broadcast %cst_9 : f32 to vector<1x64xf32>
    %15 = arith.mulf %10, %14 : vector<1x64xf32>
    %cst_10 = arith.constant 3.125000e-02 : f32
    %16 = vector.broadcast %cst_10 : f32 to vector<1x64xf32>
    %17 = arith.mulf %13, %16 : vector<1x64xf32>
    %18 = arith.mulf %15, %15 : vector<1x64xf32>
    %19 = arith.subf %17, %18 : vector<1x64xf32>
    %cst_11 = arith.constant 9.99999974E-6 : f32
    %20 = vector.broadcast %cst_11 : f32 to vector<1x64xf32>
    %21 = arith.addf %19, %20 : vector<1x64xf32>
    %22 = math.rsqrt %21 : vector<1x64xf32>
    %23 = arith.mulf %22, %2 : vector<1x64xf32>
    %24 = arith.mulf %15, %23 : vector<1x64xf32>
    %25 = arith.subf %3, %24 : vector<1x64xf32>
    %26 = vector.broadcast %23 : vector<1x64xf32> to vector<32x64xf32>
    %27 = arith.mulf %8, %26 : vector<32x64xf32>
    %28 = vector.broadcast %25 : vector<1x64xf32> to vector<32x64xf32>
    %29 = arith.addf %27, %28 : vector<32x64xf32>
    %cst_12 = arith.constant 5.000000e-01 : f32
    %30 = vector.broadcast %cst_12 : f32 to vector<32x64xf32>
    %31 = arith.mulf %30, %29 : vector<32x64xf32>
    %cst_13 = arith.constant 0.707106769 : f32
    %32 = vector.broadcast %cst_13 : f32 to vector<32x64xf32>
    %33 = arith.mulf %29, %32 : vector<32x64xf32>
    %cst_14 = arith.constant 0.000000e+00 : f32
    %34 = vector.broadcast %cst_14 : f32 to vector<32x64xf32>
    %35 = arith.cmpf oge, %33, %34 : vector<32x64xf32>
    %cst_15 = arith.constant 1.000000e+00 : f32
    %cst_16 = arith.constant -1.000000e+00 : f32
    %36 = vector.broadcast %cst_15 : f32 to vector<32x64xf32>
    %37 = vector.broadcast %cst_16 : f32 to vector<32x64xf32>
    %38 = arith.select %35, %36, %37 : vector<32x64xi1>, vector<32x64xf32>
    %39 = math.absf %33 : vector<32x64xf32>
    %cst_17 = arith.constant 0.327591091 : f32
    %40 = vector.broadcast %cst_17 : f32 to vector<32x64xf32>
    %41 = arith.mulf %40, %39 : vector<32x64xf32>
    %cst_18 = arith.constant 1.000000e+00 : f32
    %42 = vector.broadcast %cst_18 : f32 to vector<32x64xf32>
    %43 = arith.addf %42, %41 : vector<32x64xf32>
    %44 = tpu.reciprocal %43 {approx = true} : vector<32x64xf32> -> vector<32x64xf32>
    %cst_19 = arith.constant 1.06140542 : f32
    %45 = vector.broadcast %cst_19 : f32 to vector<32x64xf32>
    %46 = arith.mulf %45, %44 : vector<32x64xf32>
    %cst_20 = arith.constant -1.45315206 : f32
    %47 = vector.broadcast %cst_20 : f32 to vector<32x64xf32>
    %48 = arith.addf %46, %47 : vector<32x64xf32>
    %49 = arith.mulf %48, %44 : vector<32x64xf32>
    %cst_21 = arith.constant 1.42141378 : f32
    %50 = vector.broadcast %cst_21 : f32 to vector<32x64xf32>
    %51 = arith.addf %49, %50 : vector<32x64xf32>
    %52 = arith.mulf %51, %44 : vector<32x64xf32>
    %cst_22 = arith.constant -0.284496725 : f32
    %53 = vector.broadcast %cst_22 : f32 to vector<32x64xf32>
    %54 = arith.addf %52, %53 : vector<32x64xf32>
    %55 = arith.mulf %54, %44 : vector<32x64xf32>
    %cst_23 = arith.constant 0.254829586 : f32
    %56 = vector.broadcast %cst_23 : f32 to vector<32x64xf32>
    %57 = arith.addf %55, %56 : vector<32x64xf32>
    %58 = arith.mulf %57, %44 : vector<32x64xf32>
    %cst_24 = arith.constant 0.000000e+00 : f32
    %59 = vector.broadcast %cst_24 : f32 to vector<32x64xf32>
    %60 = arith.subf %59, %39 : vector<32x64xf32>
    %61 = arith.mulf %60, %39 : vector<32x64xf32>
    %62 = math.exp %61 : vector<32x64xf32>
    %63 = arith.mulf %58, %62 : vector<32x64xf32>
    %cst_25 = arith.constant 1.000000e+00 : f32
    %64 = vector.broadcast %cst_25 : f32 to vector<32x64xf32>
    %65 = arith.subf %64, %63 : vector<32x64xf32>
    %66 = arith.mulf %38, %65 : vector<32x64xf32>
    %cst_26 = arith.constant 1.000000e+00 : f32
    %67 = vector.broadcast %cst_26 : f32 to vector<32x64xf32>
    %68 = arith.addf %67, %66 : vector<32x64xf32>
    %69 = arith.mulf %31, %68 : vector<32x64xf32>
    %c3 = arith.constant 3 : index
    %c0_27 = arith.constant 0 : index
    %70 = vector.load %arg9[%c3, %c0_27] : memref<18x128xf32, #tpu.memory_space<vmem>>, vector<1x32xf32>
    %c4 = arith.constant 4 : index
    %c0_28 = arith.constant 0 : index
    %71 = vector.load %arg9[%c4, %c0_28] : memref<18x128xf32, #tpu.memory_space<vmem>>, vector<1x32xf32>
    %c5 = arith.constant 5 : index
    %c0_29 = arith.constant 0 : index
    %72 = vector.load %arg9[%c5, %c0_29] : memref<18x128xf32, #tpu.memory_space<vmem>>, vector<1x32xf32>
    %c0_30 = arith.constant 0 : index
    %c0_31 = arith.constant 0 : index
    %73 = vector.load %arg4[%c0_30, %c0_31] : memref<64x32xbf16, #tpu.memory_space<vmem>>, vector<64x32xbf16>
    %74 = arith.truncf %69 : vector<32x64xf32> to vector<32x64xbf16>
    %cst_32 = arith.constant dense<0.000000e+00> : vector<32x32xf32>
    %75 = tpu.matmul %74, %73, %cst_32 {dimension_numbers = #tpu.dot_dimension_numbers<[1], [0], [0], [1], [0, 0, 1, 1], [], []>} : vector<32x64xbf16>, vector<64x32xbf16>, vector<32x32xf32> -> vector<32x32xf32>
    %76 = vector.broadcast %70 : vector<1x32xf32> to vector<32x32xf32>
    %77 = arith.addf %75, %76 : vector<32x32xf32>
    %cst_33 = arith.constant dense<0.000000e+00> : vector<32xf32>
    %78 = vector.multi_reduction <add>, %77, %cst_33 [0] : vector<32x32xf32> to vector<32xf32>
    %79 = vector.shape_cast %78 : vector<32xf32> to vector<1x32xf32>
    %80 = arith.mulf %77, %77 : vector<32x32xf32>
    %cst_34 = arith.constant dense<0.000000e+00> : vector<32xf32>
    %81 = vector.multi_reduction <add>, %80, %cst_34 [0] : vector<32x32xf32> to vector<32xf32>
    %82 = vector.shape_cast %81 : vector<32xf32> to vector<1x32xf32>
    %cst_35 = arith.constant 3.125000e-02 : f32
    %83 = vector.broadcast %cst_35 : f32 to vector<1x32xf32>
    %84 = arith.mulf %79, %83 : vector<1x32xf32>
    %cst_36 = arith.constant 3.125000e-02 : f32
    %85 = vector.broadcast %cst_36 : f32 to vector<1x32xf32>
    %86 = arith.mulf %82, %85 : vector<1x32xf32>
    %87 = arith.mulf %84, %84 : vector<1x32xf32>
    %88 = arith.subf %86, %87 : vector<1x32xf32>
    %cst_37 = arith.constant 9.99999974E-6 : f32
    %89 = vector.broadcast %cst_37 : f32 to vector<1x32xf32>
    %90 = arith.addf %88, %89 : vector<1x32xf32>
    %91 = math.rsqrt %90 : vector<1x32xf32>
    %92 = arith.mulf %91, %71 : vector<1x32xf32>
    %93 = arith.mulf %84, %92 : vector<1x32xf32>
    %94 = arith.subf %72, %93 : vector<1x32xf32>
    %95 = vector.broadcast %92 : vector<1x32xf32> to vector<32x32xf32>
    %96 = arith.mulf %77, %95 : vector<32x32xf32>
    %97 = vector.broadcast %94 : vector<1x32xf32> to vector<32x32xf32>
    %98 = arith.addf %96, %97 : vector<32x32xf32>
    %cst_38 = arith.constant 5.000000e-01 : f32
    %99 = vector.broadcast %cst_38 : f32 to vector<32x32xf32>
    %100 = arith.mulf %99, %98 : vector<32x32xf32>
    %cst_39 = arith.constant 0.707106769 : f32
    %101 = vector.broadcast %cst_39 : f32 to vector<32x32xf32>
    %102 = arith.mulf %98, %101 : vector<32x32xf32>
    %cst_40 = arith.constant 0.000000e+00 : f32
    %103 = vector.broadcast %cst_40 : f32 to vector<32x32xf32>
    %104 = arith.cmpf oge, %102, %103 : vector<32x32xf32>
    %cst_41 = arith.constant 1.000000e+00 : f32
    %cst_42 = arith.constant -1.000000e+00 : f32
    %105 = vector.broadcast %cst_41 : f32 to vector<32x32xf32>
    %106 = vector.broadcast %cst_42 : f32 to vector<32x32xf32>
    %107 = arith.select %104, %105, %106 : vector<32x32xi1>, vector<32x32xf32>
    %108 = math.absf %102 : vector<32x32xf32>
    %cst_43 = arith.constant 0.327591091 : f32
    %109 = vector.broadcast %cst_43 : f32 to vector<32x32xf32>
    %110 = arith.mulf %109, %108 : vector<32x32xf32>
    %cst_44 = arith.constant 1.000000e+00 : f32
    %111 = vector.broadcast %cst_44 : f32 to vector<32x32xf32>
    %112 = arith.addf %111, %110 : vector<32x32xf32>
    %113 = tpu.reciprocal %112 {approx = true} : vector<32x32xf32> -> vector<32x32xf32>
    %cst_45 = arith.constant 1.06140542 : f32
    %114 = vector.broadcast %cst_45 : f32 to vector<32x32xf32>
    %115 = arith.mulf %114, %113 : vector<32x32xf32>
    %cst_46 = arith.constant -1.45315206 : f32
    %116 = vector.broadcast %cst_46 : f32 to vector<32x32xf32>
    %117 = arith.addf %115, %116 : vector<32x32xf32>
    %118 = arith.mulf %117, %113 : vector<32x32xf32>
    %cst_47 = arith.constant 1.42141378 : f32
    %119 = vector.broadcast %cst_47 : f32 to vector<32x32xf32>
    %120 = arith.addf %118, %119 : vector<32x32xf32>
    %121 = arith.mulf %120, %113 : vector<32x32xf32>
    %cst_48 = arith.constant -0.284496725 : f32
    %122 = vector.broadcast %cst_48 : f32 to vector<32x32xf32>
    %123 = arith.addf %121, %122 : vector<32x32xf32>
    %124 = arith.mulf %123, %113 : vector<32x32xf32>
    %cst_49 = arith.constant 0.254829586 : f32
    %125 = vector.broadcast %cst_49 : f32 to vector<32x32xf32>
    %126 = arith.addf %124, %125 : vector<32x32xf32>
    %127 = arith.mulf %126, %113 : vector<32x32xf32>
    %cst_50 = arith.constant 0.000000e+00 : f32
    %128 = vector.broadcast %cst_50 : f32 to vector<32x32xf32>
    %129 = arith.subf %128, %108 : vector<32x32xf32>
    %130 = arith.mulf %129, %108 : vector<32x32xf32>
    %131 = math.exp %130 : vector<32x32xf32>
    %132 = arith.mulf %127, %131 : vector<32x32xf32>
    %cst_51 = arith.constant 1.000000e+00 : f32
    %133 = vector.broadcast %cst_51 : f32 to vector<32x32xf32>
    %134 = arith.subf %133, %132 : vector<32x32xf32>
    %135 = arith.mulf %107, %134 : vector<32x32xf32>
    %cst_52 = arith.constant 1.000000e+00 : f32
    %136 = vector.broadcast %cst_52 : f32 to vector<32x32xf32>
    %137 = arith.addf %136, %135 : vector<32x32xf32>
    %138 = arith.mulf %100, %137 : vector<32x32xf32>
    %c6 = arith.constant 6 : index
    %c0_53 = arith.constant 0 : index
    %139 = vector.load %arg9[%c6, %c0_53] : memref<18x128xf32, #tpu.memory_space<vmem>>, vector<1x16xf32>
    %c7 = arith.constant 7 : index
    %c0_54 = arith.constant 0 : index
    %140 = vector.load %arg9[%c7, %c0_54] : memref<18x128xf32, #tpu.memory_space<vmem>>, vector<1x16xf32>
    %c8 = arith.constant 8 : index
    %c0_55 = arith.constant 0 : index
    %141 = vector.load %arg9[%c8, %c0_55] : memref<18x128xf32, #tpu.memory_space<vmem>>, vector<1x16xf32>
    %c0_56 = arith.constant 0 : index
    %c0_57 = arith.constant 0 : index
    %142 = vector.load %arg5[%c0_56, %c0_57] : memref<32x16xbf16, #tpu.memory_space<vmem>>, vector<32x16xbf16>
    %143 = arith.truncf %138 : vector<32x32xf32> to vector<32x32xbf16>
    %cst_58 = arith.constant dense<0.000000e+00> : vector<32x16xf32>
    %144 = tpu.matmul %143, %142, %cst_58 {dimension_numbers = #tpu.dot_dimension_numbers<[1], [0], [0], [1], [0, 0, 1, 1], [], []>} : vector<32x32xbf16>, vector<32x16xbf16>, vector<32x16xf32> -> vector<32x16xf32>
    %145 = vector.broadcast %139 : vector<1x16xf32> to vector<32x16xf32>
    %146 = arith.addf %144, %145 : vector<32x16xf32>
    %cst_59 = arith.constant dense<0.000000e+00> : vector<16xf32>
    %147 = vector.multi_reduction <add>, %146, %cst_59 [0] : vector<32x16xf32> to vector<16xf32>
    %148 = vector.shape_cast %147 : vector<16xf32> to vector<1x16xf32>
    %149 = arith.mulf %146, %146 : vector<32x16xf32>
    %cst_60 = arith.constant dense<0.000000e+00> : vector<16xf32>
    %150 = vector.multi_reduction <add>, %149, %cst_60 [0] : vector<32x16xf32> to vector<16xf32>
    %151 = vector.shape_cast %150 : vector<16xf32> to vector<1x16xf32>
    %cst_61 = arith.constant 3.125000e-02 : f32
    %152 = vector.broadcast %cst_61 : f32 to vector<1x16xf32>
    %153 = arith.mulf %148, %152 : vector<1x16xf32>
    %cst_62 = arith.constant 3.125000e-02 : f32
    %154 = vector.broadcast %cst_62 : f32 to vector<1x16xf32>
    %155 = arith.mulf %151, %154 : vector<1x16xf32>
    %156 = arith.mulf %153, %153 : vector<1x16xf32>
    %157 = arith.subf %155, %156 : vector<1x16xf32>
    %cst_63 = arith.constant 9.99999974E-6 : f32
    %158 = vector.broadcast %cst_63 : f32 to vector<1x16xf32>
    %159 = arith.addf %157, %158 : vector<1x16xf32>
    %160 = math.rsqrt %159 : vector<1x16xf32>
    %161 = arith.mulf %160, %140 : vector<1x16xf32>
    %162 = arith.mulf %153, %161 : vector<1x16xf32>
    %163 = arith.subf %141, %162 : vector<1x16xf32>
    %164 = vector.broadcast %161 : vector<1x16xf32> to vector<32x16xf32>
    %165 = arith.mulf %146, %164 : vector<32x16xf32>
    %166 = vector.broadcast %163 : vector<1x16xf32> to vector<32x16xf32>
    %167 = arith.addf %165, %166 : vector<32x16xf32>
    %cst_64 = arith.constant 5.000000e-01 : f32
    %168 = vector.broadcast %cst_64 : f32 to vector<32x16xf32>
    %169 = arith.mulf %168, %167 : vector<32x16xf32>
    %cst_65 = arith.constant 0.707106769 : f32
    %170 = vector.broadcast %cst_65 : f32 to vector<32x16xf32>
    %171 = arith.mulf %167, %170 : vector<32x16xf32>
    %cst_66 = arith.constant 0.000000e+00 : f32
    %172 = vector.broadcast %cst_66 : f32 to vector<32x16xf32>
    %173 = arith.cmpf oge, %171, %172 : vector<32x16xf32>
    %cst_67 = arith.constant 1.000000e+00 : f32
    %cst_68 = arith.constant -1.000000e+00 : f32
    %174 = vector.broadcast %cst_67 : f32 to vector<32x16xf32>
    %175 = vector.broadcast %cst_68 : f32 to vector<32x16xf32>
    %176 = arith.select %173, %174, %175 : vector<32x16xi1>, vector<32x16xf32>
    %177 = math.absf %171 : vector<32x16xf32>
    %cst_69 = arith.constant 0.327591091 : f32
    %178 = vector.broadcast %cst_69 : f32 to vector<32x16xf32>
    %179 = arith.mulf %178, %177 : vector<32x16xf32>
    %cst_70 = arith.constant 1.000000e+00 : f32
    %180 = vector.broadcast %cst_70 : f32 to vector<32x16xf32>
    %181 = arith.addf %180, %179 : vector<32x16xf32>
    %182 = tpu.reciprocal %181 {approx = true} : vector<32x16xf32> -> vector<32x16xf32>
    %cst_71 = arith.constant 1.06140542 : f32
    %183 = vector.broadcast %cst_71 : f32 to vector<32x16xf32>
    %184 = arith.mulf %183, %182 : vector<32x16xf32>
    %cst_72 = arith.constant -1.45315206 : f32
    %185 = vector.broadcast %cst_72 : f32 to vector<32x16xf32>
    %186 = arith.addf %184, %185 : vector<32x16xf32>
    %187 = arith.mulf %186, %182 : vector<32x16xf32>
    %cst_73 = arith.constant 1.42141378 : f32
    %188 = vector.broadcast %cst_73 : f32 to vector<32x16xf32>
    %189 = arith.addf %187, %188 : vector<32x16xf32>
    %190 = arith.mulf %189, %182 : vector<32x16xf32>
    %cst_74 = arith.constant -0.284496725 : f32
    %191 = vector.broadcast %cst_74 : f32 to vector<32x16xf32>
    %192 = arith.addf %190, %191 : vector<32x16xf32>
    %193 = arith.mulf %192, %182 : vector<32x16xf32>
    %cst_75 = arith.constant 0.254829586 : f32
    %194 = vector.broadcast %cst_75 : f32 to vector<32x16xf32>
    %195 = arith.addf %193, %194 : vector<32x16xf32>
    %196 = arith.mulf %195, %182 : vector<32x16xf32>
    %cst_76 = arith.constant 0.000000e+00 : f32
    %197 = vector.broadcast %cst_76 : f32 to vector<32x16xf32>
    %198 = arith.subf %197, %177 : vector<32x16xf32>
    %199 = arith.mulf %198, %177 : vector<32x16xf32>
    %200 = math.exp %199 : vector<32x16xf32>
    %201 = arith.mulf %196, %200 : vector<32x16xf32>
    %cst_77 = arith.constant 1.000000e+00 : f32
    %202 = vector.broadcast %cst_77 : f32 to vector<32x16xf32>
    %203 = arith.subf %202, %201 : vector<32x16xf32>
    %204 = arith.mulf %176, %203 : vector<32x16xf32>
    %cst_78 = arith.constant 1.000000e+00 : f32
    %205 = vector.broadcast %cst_78 : f32 to vector<32x16xf32>
    %206 = arith.addf %205, %204 : vector<32x16xf32>
    %207 = arith.mulf %169, %206 : vector<32x16xf32>
    %c9 = arith.constant 9 : index
    %c0_79 = arith.constant 0 : index
    %208 = vector.load %arg9[%c9, %c0_79] : memref<18x128xf32, #tpu.memory_space<vmem>>, vector<1x32xf32>
    %c10 = arith.constant 10 : index
    %c0_80 = arith.constant 0 : index
    %209 = vector.load %arg9[%c10, %c0_80] : memref<18x128xf32, #tpu.memory_space<vmem>>, vector<1x32xf32>
    %c11 = arith.constant 11 : index
    %c0_81 = arith.constant 0 : index
    %210 = vector.load %arg9[%c11, %c0_81] : memref<18x128xf32, #tpu.memory_space<vmem>>, vector<1x32xf32>
    %c0_82 = arith.constant 0 : index
    %c0_83 = arith.constant 0 : index
    %211 = vector.load %arg6[%c0_82, %c0_83] : memref<16x32xbf16, #tpu.memory_space<vmem>>, vector<16x32xbf16>
    %212 = arith.truncf %207 : vector<32x16xf32> to vector<32x16xbf16>
    %cst_84 = arith.constant dense<0.000000e+00> : vector<32x32xf32>
    %213 = tpu.matmul %212, %211, %cst_84 {dimension_numbers = #tpu.dot_dimension_numbers<[1], [0], [0], [1], [0, 0, 1, 1], [], []>} : vector<32x16xbf16>, vector<16x32xbf16>, vector<32x32xf32> -> vector<32x32xf32>
    %214 = vector.broadcast %208 : vector<1x32xf32> to vector<32x32xf32>
    %215 = arith.addf %213, %214 : vector<32x32xf32>
    %cst_85 = arith.constant dense<0.000000e+00> : vector<32xf32>
    %216 = vector.multi_reduction <add>, %215, %cst_85 [0] : vector<32x32xf32> to vector<32xf32>
    %217 = vector.shape_cast %216 : vector<32xf32> to vector<1x32xf32>
    %218 = arith.mulf %215, %215 : vector<32x32xf32>
    %cst_86 = arith.constant dense<0.000000e+00> : vector<32xf32>
    %219 = vector.multi_reduction <add>, %218, %cst_86 [0] : vector<32x32xf32> to vector<32xf32>
    %220 = vector.shape_cast %219 : vector<32xf32> to vector<1x32xf32>
    %cst_87 = arith.constant 3.125000e-02 : f32
    %221 = vector.broadcast %cst_87 : f32 to vector<1x32xf32>
    %222 = arith.mulf %217, %221 : vector<1x32xf32>
    %cst_88 = arith.constant 3.125000e-02 : f32
    %223 = vector.broadcast %cst_88 : f32 to vector<1x32xf32>
    %224 = arith.mulf %220, %223 : vector<1x32xf32>
    %225 = arith.mulf %222, %222 : vector<1x32xf32>
    %226 = arith.subf %224, %225 : vector<1x32xf32>
    %cst_89 = arith.constant 9.99999974E-6 : f32
    %227 = vector.broadcast %cst_89 : f32 to vector<1x32xf32>
    %228 = arith.addf %226, %227 : vector<1x32xf32>
    %229 = math.rsqrt %228 : vector<1x32xf32>
    %230 = arith.mulf %229, %209 : vector<1x32xf32>
    %231 = arith.mulf %222, %230 : vector<1x32xf32>
    %232 = arith.subf %210, %231 : vector<1x32xf32>
    %233 = vector.broadcast %230 : vector<1x32xf32> to vector<32x32xf32>
    %234 = arith.mulf %215, %233 : vector<32x32xf32>
    %235 = vector.broadcast %232 : vector<1x32xf32> to vector<32x32xf32>
    %236 = arith.addf %234, %235 : vector<32x32xf32>
    %cst_90 = arith.constant 5.000000e-01 : f32
    %237 = vector.broadcast %cst_90 : f32 to vector<32x32xf32>
    %238 = arith.mulf %237, %236 : vector<32x32xf32>
    %cst_91 = arith.constant 0.707106769 : f32
    %239 = vector.broadcast %cst_91 : f32 to vector<32x32xf32>
    %240 = arith.mulf %236, %239 : vector<32x32xf32>
    %cst_92 = arith.constant 0.000000e+00 : f32
    %241 = vector.broadcast %cst_92 : f32 to vector<32x32xf32>
    %242 = arith.cmpf oge, %240, %241 : vector<32x32xf32>
    %cst_93 = arith.constant 1.000000e+00 : f32
    %cst_94 = arith.constant -1.000000e+00 : f32
    %243 = vector.broadcast %cst_93 : f32 to vector<32x32xf32>
    %244 = vector.broadcast %cst_94 : f32 to vector<32x32xf32>
    %245 = arith.select %242, %243, %244 : vector<32x32xi1>, vector<32x32xf32>
    %246 = math.absf %240 : vector<32x32xf32>
    %cst_95 = arith.constant 0.327591091 : f32
    %247 = vector.broadcast %cst_95 : f32 to vector<32x32xf32>
    %248 = arith.mulf %247, %246 : vector<32x32xf32>
    %cst_96 = arith.constant 1.000000e+00 : f32
    %249 = vector.broadcast %cst_96 : f32 to vector<32x32xf32>
    %250 = arith.addf %249, %248 : vector<32x32xf32>
    %251 = tpu.reciprocal %250 {approx = true} : vector<32x32xf32> -> vector<32x32xf32>
    %cst_97 = arith.constant 1.06140542 : f32
    %252 = vector.broadcast %cst_97 : f32 to vector<32x32xf32>
    %253 = arith.mulf %252, %251 : vector<32x32xf32>
    %cst_98 = arith.constant -1.45315206 : f32
    %254 = vector.broadcast %cst_98 : f32 to vector<32x32xf32>
    %255 = arith.addf %253, %254 : vector<32x32xf32>
    %256 = arith.mulf %255, %251 : vector<32x32xf32>
    %cst_99 = arith.constant 1.42141378 : f32
    %257 = vector.broadcast %cst_99 : f32 to vector<32x32xf32>
    %258 = arith.addf %256, %257 : vector<32x32xf32>
    %259 = arith.mulf %258, %251 : vector<32x32xf32>
    %cst_100 = arith.constant -0.284496725 : f32
    %260 = vector.broadcast %cst_100 : f32 to vector<32x32xf32>
    %261 = arith.addf %259, %260 : vector<32x32xf32>
    %262 = arith.mulf %261, %251 : vector<32x32xf32>
    %cst_101 = arith.constant 0.254829586 : f32
    %263 = vector.broadcast %cst_101 : f32 to vector<32x32xf32>
    %264 = arith.addf %262, %263 : vector<32x32xf32>
    %265 = arith.mulf %264, %251 : vector<32x32xf32>
    %cst_102 = arith.constant 0.000000e+00 : f32
    %266 = vector.broadcast %cst_102 : f32 to vector<32x32xf32>
    %267 = arith.subf %266, %246 : vector<32x32xf32>
    %268 = arith.mulf %267, %246 : vector<32x32xf32>
    %269 = math.exp %268 : vector<32x32xf32>
    %270 = arith.mulf %265, %269 : vector<32x32xf32>
    %cst_103 = arith.constant 1.000000e+00 : f32
    %271 = vector.broadcast %cst_103 : f32 to vector<32x32xf32>
    %272 = arith.subf %271, %270 : vector<32x32xf32>
    %273 = arith.mulf %245, %272 : vector<32x32xf32>
    %cst_104 = arith.constant 1.000000e+00 : f32
    %274 = vector.broadcast %cst_104 : f32 to vector<32x32xf32>
    %275 = arith.addf %274, %273 : vector<32x32xf32>
    %276 = arith.mulf %238, %275 : vector<32x32xf32>
    %c12 = arith.constant 12 : index
    %c0_105 = arith.constant 0 : index
    %277 = vector.load %arg9[%c12, %c0_105] : memref<18x128xf32, #tpu.memory_space<vmem>>, vector<1x64xf32>
    %c13 = arith.constant 13 : index
    %c0_106 = arith.constant 0 : index
    %278 = vector.load %arg9[%c13, %c0_106] : memref<18x128xf32, #tpu.memory_space<vmem>>, vector<1x64xf32>
    %c14 = arith.constant 14 : index
    %c0_107 = arith.constant 0 : index
    %279 = vector.load %arg9[%c14, %c0_107] : memref<18x128xf32, #tpu.memory_space<vmem>>, vector<1x64xf32>
    %c0_108 = arith.constant 0 : index
    %c0_109 = arith.constant 0 : index
    %280 = vector.load %arg7[%c0_108, %c0_109] : memref<32x64xbf16, #tpu.memory_space<vmem>>, vector<32x64xbf16>
    %281 = arith.truncf %276 : vector<32x32xf32> to vector<32x32xbf16>
    %cst_110 = arith.constant dense<0.000000e+00> : vector<32x64xf32>
    %282 = tpu.matmul %281, %280, %cst_110 {dimension_numbers = #tpu.dot_dimension_numbers<[1], [0], [0], [1], [0, 0, 1, 1], [], []>} : vector<32x32xbf16>, vector<32x64xbf16>, vector<32x64xf32> -> vector<32x64xf32>
    %283 = vector.broadcast %277 : vector<1x64xf32> to vector<32x64xf32>
    %284 = arith.addf %282, %283 : vector<32x64xf32>
    %cst_111 = arith.constant dense<0.000000e+00> : vector<64xf32>
    %285 = vector.multi_reduction <add>, %284, %cst_111 [0] : vector<32x64xf32> to vector<64xf32>
    %286 = vector.shape_cast %285 : vector<64xf32> to vector<1x64xf32>
    %287 = arith.mulf %284, %284 : vector<32x64xf32>
    %cst_112 = arith.constant dense<0.000000e+00> : vector<64xf32>
    %288 = vector.multi_reduction <add>, %287, %cst_112 [0] : vector<32x64xf32> to vector<64xf32>
    %289 = vector.shape_cast %288 : vector<64xf32> to vector<1x64xf32>
    %cst_113 = arith.constant 3.125000e-02 : f32
    %290 = vector.broadcast %cst_113 : f32 to vector<1x64xf32>
    %291 = arith.mulf %286, %290 : vector<1x64xf32>
    %cst_114 = arith.constant 3.125000e-02 : f32
    %292 = vector.broadcast %cst_114 : f32 to vector<1x64xf32>
    %293 = arith.mulf %289, %292 : vector<1x64xf32>
    %294 = arith.mulf %291, %291 : vector<1x64xf32>
    %295 = arith.subf %293, %294 : vector<1x64xf32>
    %cst_115 = arith.constant 9.99999974E-6 : f32
    %296 = vector.broadcast %cst_115 : f32 to vector<1x64xf32>
    %297 = arith.addf %295, %296 : vector<1x64xf32>
    %298 = math.rsqrt %297 : vector<1x64xf32>
    %299 = arith.mulf %298, %278 : vector<1x64xf32>
    %300 = arith.mulf %291, %299 : vector<1x64xf32>
    %301 = arith.subf %279, %300 : vector<1x64xf32>
    %302 = vector.broadcast %299 : vector<1x64xf32> to vector<32x64xf32>
    %303 = arith.mulf %284, %302 : vector<32x64xf32>
    %304 = vector.broadcast %301 : vector<1x64xf32> to vector<32x64xf32>
    %305 = arith.addf %303, %304 : vector<32x64xf32>
    %cst_116 = arith.constant 5.000000e-01 : f32
    %306 = vector.broadcast %cst_116 : f32 to vector<32x64xf32>
    %307 = arith.mulf %306, %305 : vector<32x64xf32>
    %cst_117 = arith.constant 0.707106769 : f32
    %308 = vector.broadcast %cst_117 : f32 to vector<32x64xf32>
    %309 = arith.mulf %305, %308 : vector<32x64xf32>
    %cst_118 = arith.constant 0.000000e+00 : f32
    %310 = vector.broadcast %cst_118 : f32 to vector<32x64xf32>
    %311 = arith.cmpf oge, %309, %310 : vector<32x64xf32>
    %cst_119 = arith.constant 1.000000e+00 : f32
    %cst_120 = arith.constant -1.000000e+00 : f32
    %312 = vector.broadcast %cst_119 : f32 to vector<32x64xf32>
    %313 = vector.broadcast %cst_120 : f32 to vector<32x64xf32>
    %314 = arith.select %311, %312, %313 : vector<32x64xi1>, vector<32x64xf32>
    %315 = math.absf %309 : vector<32x64xf32>
    %cst_121 = arith.constant 0.327591091 : f32
    %316 = vector.broadcast %cst_121 : f32 to vector<32x64xf32>
    %317 = arith.mulf %316, %315 : vector<32x64xf32>
    %cst_122 = arith.constant 1.000000e+00 : f32
    %318 = vector.broadcast %cst_122 : f32 to vector<32x64xf32>
    %319 = arith.addf %318, %317 : vector<32x64xf32>
    %320 = tpu.reciprocal %319 {approx = true} : vector<32x64xf32> -> vector<32x64xf32>
    %cst_123 = arith.constant 1.06140542 : f32
    %321 = vector.broadcast %cst_123 : f32 to vector<32x64xf32>
    %322 = arith.mulf %321, %320 : vector<32x64xf32>
    %cst_124 = arith.constant -1.45315206 : f32
    %323 = vector.broadcast %cst_124 : f32 to vector<32x64xf32>
    %324 = arith.addf %322, %323 : vector<32x64xf32>
    %325 = arith.mulf %324, %320 : vector<32x64xf32>
    %cst_125 = arith.constant 1.42141378 : f32
    %326 = vector.broadcast %cst_125 : f32 to vector<32x64xf32>
    %327 = arith.addf %325, %326 : vector<32x64xf32>
    %328 = arith.mulf %327, %320 : vector<32x64xf32>
    %cst_126 = arith.constant -0.284496725 : f32
    %329 = vector.broadcast %cst_126 : f32 to vector<32x64xf32>
    %330 = arith.addf %328, %329 : vector<32x64xf32>
    %331 = arith.mulf %330, %320 : vector<32x64xf32>
    %cst_127 = arith.constant 0.254829586 : f32
    %332 = vector.broadcast %cst_127 : f32 to vector<32x64xf32>
    %333 = arith.addf %331, %332 : vector<32x64xf32>
    %334 = arith.mulf %333, %320 : vector<32x64xf32>
    %cst_128 = arith.constant 0.000000e+00 : f32
    %335 = vector.broadcast %cst_128 : f32 to vector<32x64xf32>
    %336 = arith.subf %335, %315 : vector<32x64xf32>
    %337 = arith.mulf %336, %315 : vector<32x64xf32>
    %338 = math.exp %337 : vector<32x64xf32>
    %339 = arith.mulf %334, %338 : vector<32x64xf32>
    %cst_129 = arith.constant 1.000000e+00 : f32
    %340 = vector.broadcast %cst_129 : f32 to vector<32x64xf32>
    %341 = arith.subf %340, %339 : vector<32x64xf32>
    %342 = arith.mulf %314, %341 : vector<32x64xf32>
    %cst_130 = arith.constant 1.000000e+00 : f32
    %343 = vector.broadcast %cst_130 : f32 to vector<32x64xf32>
    %344 = arith.addf %343, %342 : vector<32x64xf32>
    %345 = arith.mulf %307, %344 : vector<32x64xf32>
    %c15 = arith.constant 15 : index
    %c0_131 = arith.constant 0 : index
    %346 = vector.load %arg9[%c15, %c0_131] : memref<18x128xf32, #tpu.memory_space<vmem>>, vector<1x128xf32>
    %c16 = arith.constant 16 : index
    %c0_132 = arith.constant 0 : index
    %347 = vector.load %arg9[%c16, %c0_132] : memref<18x128xf32, #tpu.memory_space<vmem>>, vector<1x128xf32>
    %c17 = arith.constant 17 : index
    %c0_133 = arith.constant 0 : index
    %348 = vector.load %arg9[%c17, %c0_133] : memref<18x128xf32, #tpu.memory_space<vmem>>, vector<1x128xf32>
    %c0_134 = arith.constant 0 : index
    %c0_135 = arith.constant 0 : index
    %349 = vector.load %arg8[%c0_134, %c0_135] : memref<64x128xbf16, #tpu.memory_space<vmem>>, vector<64x128xbf16>
    %350 = arith.truncf %345 : vector<32x64xf32> to vector<32x64xbf16>
    %cst_136 = arith.constant dense<0.000000e+00> : vector<32x128xf32>
    %351 = tpu.matmul %350, %349, %cst_136 {dimension_numbers = #tpu.dot_dimension_numbers<[1], [0], [0], [1], [0, 0, 1, 1], [], []>} : vector<32x64xbf16>, vector<64x128xbf16>, vector<32x128xf32> -> vector<32x128xf32>
    %352 = vector.broadcast %346 : vector<1x128xf32> to vector<32x128xf32>
    %353 = arith.addf %351, %352 : vector<32x128xf32>
    %cst_137 = arith.constant dense<0.000000e+00> : vector<128xf32>
    %354 = vector.multi_reduction <add>, %353, %cst_137 [0] : vector<32x128xf32> to vector<128xf32>
    %355 = vector.shape_cast %354 : vector<128xf32> to vector<1x128xf32>
    %356 = arith.mulf %353, %353 : vector<32x128xf32>
    %cst_138 = arith.constant dense<0.000000e+00> : vector<128xf32>
    %357 = vector.multi_reduction <add>, %356, %cst_138 [0] : vector<32x128xf32> to vector<128xf32>
    %358 = vector.shape_cast %357 : vector<128xf32> to vector<1x128xf32>
    %cst_139 = arith.constant 3.125000e-02 : f32
    %359 = vector.broadcast %cst_139 : f32 to vector<1x128xf32>
    %360 = arith.mulf %355, %359 : vector<1x128xf32>
    %cst_140 = arith.constant 3.125000e-02 : f32
    %361 = vector.broadcast %cst_140 : f32 to vector<1x128xf32>
    %362 = arith.mulf %358, %361 : vector<1x128xf32>
    %363 = arith.mulf %360, %360 : vector<1x128xf32>
    %364 = arith.subf %362, %363 : vector<1x128xf32>
    %cst_141 = arith.constant 9.99999974E-6 : f32
    %365 = vector.broadcast %cst_141 : f32 to vector<1x128xf32>
    %366 = arith.addf %364, %365 : vector<1x128xf32>
    %367 = math.rsqrt %366 : vector<1x128xf32>
    %368 = arith.mulf %367, %347 : vector<1x128xf32>
    %369 = arith.mulf %360, %368 : vector<1x128xf32>
    %370 = arith.subf %348, %369 : vector<1x128xf32>
    %371 = vector.broadcast %368 : vector<1x128xf32> to vector<32x128xf32>
    %372 = arith.mulf %353, %371 : vector<32x128xf32>
    %373 = vector.broadcast %370 : vector<1x128xf32> to vector<32x128xf32>
    %374 = arith.addf %372, %373 : vector<32x128xf32>
    %375 = vector.shape_cast %374 : vector<32x128xf32> to vector<2x16x128xf32>
    %c0_142 = arith.constant 0 : index
    %c0_143 = arith.constant 0 : index
    %376 = vector.load %arg2[%c0_142, %c0_143] : memref<16x128xf32, #tpu.memory_space<vmem>>, vector<16x128xf32>
    %377 = vector.shape_cast %376 : vector<16x128xf32> to vector<1x16x128xf32>
    %378 = vector.broadcast %377 : vector<1x16x128xf32> to vector<2x16x128xf32>
    %379 = arith.addf %375, %378 : vector<2x16x128xf32>
    %c0_144 = arith.constant 0 : index
    %c0_145 = arith.constant 0 : index
    %c0_146 = arith.constant 0 : index
    %380 = vector.load %arg10[%c0_144, %c0_145, %c0_146] : memref<2x16x128xf32, #tpu.memory_space<vmem>>, vector<2x16x128xf32>
    tpu.vector_store %arg10[%c0_144, %c0_145, %c0_146], %379 {strides = array<i32>} : memref<2x16x128xf32, #tpu.memory_space<vmem>>, vector<2x16x128xf32>,
    return
  }
  func.func @transform_0(%arg0: i32) -> (i32, i32) {
    %c0_i32 = arith.constant 0 : i32
    %c0_i32_0 = arith.constant 0 : i32
    %c0_i32_1 = arith.constant 0 : i32
    return %c0_i32, %c0_i32_0 : i32, i32
  }
  func.func @transform_1(%arg0: i32) -> (i32, i32) {
    %c0_i32 = arith.constant 0 : i32
    %c0_i32_0 = arith.constant 0 : i32
    %c0_i32_1 = arith.constant 0 : i32
    return %c0_i32, %c0_i32_0 : i32, i32
  }
  func.func @transform_2(%arg0: i32) -> (i32, i32) {
    %c0_i32 = arith.constant 0 : i32
    %c0_i32_0 = arith.constant 0 : i32
    %c0_i32_1 = arith.constant 0 : i32
    return %c0_i32, %c0_i32_0 : i32, i32
  }
  func.func @transform_3(%arg0: i32) -> (i32, i32) {
    %c0_i32 = arith.constant 0 : i32
    %c0_i32_0 = arith.constant 0 : i32
    %c0_i32_1 = arith.constant 0 : i32
    return %c0_i32, %c0_i32_0 : i32, i32
  }
  func.func @transform_4(%arg0: i32) -> (i32, i32) {
    %c0_i32 = arith.constant 0 : i32
    %c0_i32_0 = arith.constant 0 : i32
    %c0_i32_1 = arith.constant 0 : i32
    return %c0_i32, %c0_i32_0 : i32, i32
  }
  func.func @transform_5(%arg0: i32) -> (i32, i32) {
    %c0_i32 = arith.constant 0 : i32
    %c0_i32_0 = arith.constant 0 : i32
    %c0_i32_1 = arith.constant 0 : i32
    return %c0_i32, %c0_i32_0 : i32, i32
  }
  func.func @transform_6(%arg0: i32) -> (i32, i32) {
    %c0_i32 = arith.constant 0 : i32
    %c0_i32_0 = arith.constant 0 : i32
    %c0_i32_1 = arith.constant 0 : i32
    return %c0_i32, %c0_i32_0 : i32, i32
  }
  func.func @transform_7(%arg0: i32) -> (i32, i32) {
    %c0_i32 = arith.constant 0 : i32
    %c0_i32_0 = arith.constant 0 : i32
    %c0_i32_1 = arith.constant 0 : i32
    return %c0_i32, %c0_i32_0 : i32, i32
  }
  func.func @transform_8(%arg0: i32) -> (i32, i32) {
    %c0_i32 = arith.constant 0 : i32
    %c0_i32_0 = arith.constant 0 : i32
    %c0_i32_1 = arith.constant 0 : i32
    return %c0_i32, %c0_i32_0 : i32, i32
  }
  func.func @transform_9(%arg0: i32) -> (i32, i32, i32) {
    %c0_i32 = arith.constant 0 : i32
    %c0_i32_0 = arith.constant 0 : i32
    %c0_i32_1 = arith.constant 0 : i32
    %c0_i32_2 = arith.constant 0 : i32
    return %c0_i32, %c0_i32_0, %c0_i32_1 : i32, i32, i32
  }
}

</mosaic_0001>

<llo_original>
// kernel: tpu_custom_call.1
$region0: #{tpu_custom_call.1}
  #allocation0 [shape = 'u32[]', space=smem, size = 0x4, offset = 0x4, fixed_abs, tag = 'smem constant byte address 0x4 - core index']
  #allocation1 [shape = 'u32[144,128]{1,0:T(1,128)}', space=vmem, size = 0x12000, scoped, tag = 'internal scratch']
  %s0 = inlined_call_operand.vmem [shape: f32[32,48], index: 0, kind: input, shape index: {}]
  %s1 = inlined_call_operand.hbm [shape: f32[16,128], index: 1, kind: input, shape index: {}]
  %s2 = inlined_call_operand.hbm [shape: bf16[48,64], index: 2, kind: input, shape index: {}]
  %s3 = inlined_call_operand.vmem [shape: bf16[64,32], index: 3, kind: input, shape index: {}]
  %s4 = inlined_call_operand.vmem [shape: bf16[32,16], index: 4, kind: input, shape index: {}]
  %s5 = inlined_call_operand.hbm [shape: bf16[16,32], index: 5, kind: input, shape index: {}]
  %s6 = inlined_call_operand.vmem [shape: bf16[32,64], index: 6, kind: input, shape index: {}]
  %s7 = inlined_call_operand.vmem [shape: bf16[64,128], index: 7, kind: input, shape index: {}]
  %s8 = inlined_call_operand.hbm [shape: f32[18,128], index: 8, kind: input, shape index: {}]
  %s9 = inlined_call_operand.hbm [shape: f32[2,16,128], index: 9, kind: output, shape index: {}]
  %s10 = sld [smem:[#allocation0]]
  $region62: #{tpu_custom_call.1} parent=0
    _
  %s12 = ssub.s32 1, %s10
  %s13 = scalar_select 0, %s12, %s10
  $region1: #{tpu_custom_call.1} parent=0
    #allocation2 [shape = 'u8[8192]{0}', space=vmem, size = 0x2000, scoped, tag = 'input window, operand 1, single buffered']
    #allocation3 [shape = 's32[1]{0}', space=sflag, size = 0x4, scoped, tag = 'scoped memory for tpu_custom_call.1']
    #allocation4 [shape = 's32[1]{0}', space=sflag, size = 0x4, scoped, tag = 'scoped memory for tpu_custom_call.1']
    #allocation5 [shape = 'u8[12288]{0}', space=vmem, size = 0x3000, scoped, tag = 'input window, operand 2, single buffered']
    #allocation6 [shape = 's32[1]{0}', space=sflag, size = 0x4, scoped, tag = 'scoped memory for tpu_custom_call.1']
    #allocation7 [shape = 'u8[4096]{0}', space=vmem, size = 0x1000, scoped, tag = 'input window, operand 5, single buffered']
    #allocation8 [shape = 'u8[12288]{0}', space=vmem, size = 0x3000, scoped, tag = 'input window, operand 8, single buffered']
    #allocation9 [shape = 's32[1]{0}', space=sflag, size = 0x4, scoped, tag = 'scoped memory for tpu_custom_call.1']
    #allocation10 [shape = 'u8[16384]{0}', space=vmem, size = 0x4000, scoped, tag = 'output window, operand 0, single buffered']
    %14 = vsyncpa [#allocation3], 0
    %15 = vsyncpa [#allocation6], 0
    %16 = vsyncpa [#allocation9], 0
    %17 = vsyncpa [#allocation4], 0
    // Predicated region
    $region2: #{tpu_custom_call.1} parent=1 // pred_check
      _
    $region3: #{tpu_custom_call.1} parent=1 // pred_check_branch
      %19 = sbr.rel (0) target = $region5
    $region4: #{tpu_custom_call.1} parent=1 // pred_region
      _
    $region5: #{tpu_custom_call.1} parent=1 // pred_fallthru
      _
    // Predicated region
    $region6: #{tpu_custom_call.1} parent=1 // pred_check
      _
    $region7: #{tpu_custom_call.1} parent=1 // pred_check_branch
      %21 = sbr.rel (0) target = $region9
    $region8: #{tpu_custom_call.1} parent=1 // pred_region
      %s23 = ssub.s32 256, 256
      %24 = vsyncadd [#allocation3], %s23
      %s25 = sshll.u32 [#allocation2], 4
      %s26 = int_to_ptr.vmem [resolvable:$true] %s25
      %31 = dma.hbm_to_vmem [thread:$0]  %s1, 256, %s26, [#allocation3], 128, 128, 8
    $region9: #{tpu_custom_call.1} parent=1 // pred_fallthru
      _
    // Predicated region
    $region10: #{tpu_custom_call.1} parent=1 // pred_check
      _
    $region11: #{tpu_custom_call.1} parent=1 // pred_check_branch
      %33 = sbr.rel (0) target = $region13
    $region12: #{tpu_custom_call.1} parent=1 // pred_region
      %s35 = ssub.s32 384, 384
      %36 = vsyncadd [#allocation6], %s35
      %s37 = sshll.u32 [#allocation5], 4
      %s38 = int_to_ptr.vmem [resolvable:$true] %s37
      %43 = dma.hbm_to_vmem [thread:$0]  %s2, 384, %s38, [#allocation6], 64, 64, 4
    $region13: #{tpu_custom_call.1} parent=1 // pred_fallthru
      _
    // Predicated region
    $region14: #{tpu_custom_call.1} parent=1 // pred_check
      _
    $region15: #{tpu_custom_call.1} parent=1 // pred_check_branch
      %45 = sbr.rel (0) target = $region17
    $region16: #{tpu_custom_call.1} parent=1 // pred_region
      _
    $region17: #{tpu_custom_call.1} parent=1 // pred_fallthru
      _
    // Predicated region
    $region18: #{tpu_custom_call.1} parent=1 // pred_check
      _
    $region19: #{tpu_custom_call.1} parent=1 // pred_check_branch
      %47 = sbr.rel (0) target = $region21
    $region20: #{tpu_custom_call.1} parent=1 // pred_region
      _
    $region21: #{tpu_custom_call.1} parent=1 // pred_fallthru
      _
    // Predicated region
    $region22: #{tpu_custom_call.1} parent=1 // pred_check
      _
    $region23: #{tpu_custom_call.1} parent=1 // pred_check_branch
      %49 = sbr.rel (0) target = $region25
    $region24: #{tpu_custom_call.1} parent=1 // pred_region
      %s51 = ssub.s32 128, 128
      %52 = vsyncadd [#allocation6], %s51
      %s53 = sshll.u32 [#allocation7], 4
      %s54 = int_to_ptr.vmem [resolvable:$true] %s53
      %59 = dma.hbm_to_vmem [thread:$0]  %s5, 128, %s54, [#allocation6], 64, 64, 4
    $region25: #{tpu_custom_call.1} parent=1 // pred_fallthru
      _
    // Predicated region
    $region26: #{tpu_custom_call.1} parent=1 // pred_check
      _
    $region27: #{tpu_custom_call.1} parent=1 // pred_check_branch
      %61 = sbr.rel (0) target = $region29
    $region28: #{tpu_custom_call.1} parent=1 // pred_region
      _
    $region29: #{tpu_custom_call.1} parent=1 // pred_fallthru
      _
    // Predicated region
    $region30: #{tpu_custom_call.1} parent=1 // pred_check
      _
    $region31: #{tpu_custom_call.1} parent=1 // pred_check_branch
      %63 = sbr.rel (0) target = $region33
    $region32: #{tpu_custom_call.1} parent=1 // pred_region
      _
    $region33: #{tpu_custom_call.1} parent=1 // pred_fallthru
      _
    // Predicated region
    $region34: #{tpu_custom_call.1} parent=1 // pred_check
      _
    $region35: #{tpu_custom_call.1} parent=1 // pred_check_branch
      %65 = sbr.rel (0) target = $region37
    $region36: #{tpu_custom_call.1} parent=1 // pred_region
      %s67 = ssub.s32 384, 384
      %68 = vsyncadd [#allocation9], %s67
      %s69 = sshll.u32 [#allocation8], 4
      %s70 = int_to_ptr.vmem [resolvable:$true] %s69
      %75 = dma.hbm_to_vmem [thread:$0]  %s8, 384, %s70, [#allocation9], 128, 128, 8
    $region37: #{tpu_custom_call.1} parent=1 // pred_fallthru
      _
    // Predicated region
    $region38: #{tpu_custom_call.1} parent=1 // pred_check
      _
    $region39: #{tpu_custom_call.1} parent=1 // pred_check_branch
      %77 = sbr.rel (0) target = $region41
    $region40: #{tpu_custom_call.1} parent=1 // pred_region
      %78 = dma.done [#allocation3], 256
    $region41: #{tpu_custom_call.1} parent=1 // pred_fallthru
      _
    // Predicated region
    $region42: #{tpu_custom_call.1} parent=1 // pred_check
      _
    $region43: #{tpu_custom_call.1} parent=1 // pred_check_branch
      %80 = sbr.rel (0) target = $region45
    $region44: #{tpu_custom_call.1} parent=1 // pred_region
      %81 = dma.done [#allocation6], 384
    $region45: #{tpu_custom_call.1} parent=1 // pred_fallthru
      _
    // Predicated region
    $region46: #{tpu_custom_call.1} parent=1 // pred_check
      _
    $region47: #{tpu_custom_call.1} parent=1 // pred_check_branch
      %83 = sbr.rel (0) target = $region49
    $region48: #{tpu_custom_call.1} parent=1 // pred_region
      %84 = dma.done [#allocation6], 128
    $region49: #{tpu_custom_call.1} parent=1 // pred_fallthru
      _
    // Predicated region
    $region50: #{tpu_custom_call.1} parent=1 // pred_check
      _
    $region51: #{tpu_custom_call.1} parent=1 // pred_check_branch
      %86 = sbr.rel (0) target = $region53
    $region52: #{tpu_custom_call.1} parent=1 // pred_region
      %87 = dma.done [#allocation9], 384
    $region53: #{tpu_custom_call.1} parent=1 // pred_fallthru
      _
    %v89 = vld [vmem:[%s0] sm:$0xff]
    %v90 = vld [vmem:[%s0 + $0x8] sm:$0xff]
    %v91 = vld [vmem:[%s0 + $0x10] sm:$0xff]
    %v92 = vld [vmem:[%s0 + $0x18] sm:$0xff]
    %v93 = vld [vmem:[#allocation8] sm:$0x1]
    %v94 = vld [vmem:[#allocation8 + $0x1] sm:$0x1]
    %v95 = vld [vmem:[#allocation8 + $0x2] sm:$0x1]
    %v96 = vld [vmem:[#allocation5] sm:$0xf]
    %v97 = vld [vmem:[#allocation5 + $0x4] sm:$0xf]
    %v98 = vld [vmem:[#allocation5 + $0x8] sm:$0xf]
    %v99 = vld [vmem:[#allocation5 + $0xc] sm:$0xf]
    %v100 = vld [vmem:[#allocation5 + $0x10] sm:$0xf]
    %v101 = vld [vmem:[#allocation5 + $0x14] sm:$0xf]
    %v102 = vpack.c.bf16 %v90, %v89
    %v103 = vpack.c.bf16 %v92, %v91
    %v104 = vlaneseq
    %v105 = vshrl.u32 %v104, 7
    %v106 = vsub.s32 0, %v105
    %v107 = vrot.slane %v93, %v106
    %v114 = vunpack.c.l.b16 %v96
    %v115 = vunpack.c.l.b16 %v97
    %v116 = vunpack.c.l.b16 %v98
    %v117 = vunpack.c.l.b16 %v99
    %v118 = vunpack.c.l.b16 %v100
    %v119 = vunpack.c.l.b16 %v101
    %v120 = vpack.c.b16 %v115, %v114
    %v121 = vpack.c.b16 %v117, %v116
    %v122 = vpack.c.b16 %v119, %v118
    %vm126 = vcmask 392192
    %v128 = vsel %vm126, %v102, 0
    %v131 = vsel %vm126, %v103, 0
    %133 = vmatprep.subr.bf16.mxu0 0
    %134 = vmatpush1.bf16.msra.mxu0 0
    %135 = vmatprep.subr.bf16.mxu0 0
    %136 = vmatpush1.bf16.msra.mxu0 0
    %137 = vmatprep.subr.bf16.mxu0 0
    %138 = vmatpush1.bf16.msra.mxu0 0
    %139 = vmatprep.subr.bf16.mxu0 0
    %140 = vmatpush1.bf16.msra.mxu0 0
    %141 = vmatprep.subr.bf16.mxu0 0
    %142 = vmatpush1.bf16.msra.mxu0 0
    %143 = vmatprep.subr.bf16.mxu0 0
    %144 = vmatpush1.bf16.msra.mxu0 %v122
    %145 = vmatprep.subr.bf16.mxu0 0
    %146 = vmatpush1.bf16.msra.mxu0 %v121
    %147 = vmatprep.subr.bf16.mxu0 0
    %148 = vmatpush1.bf16.msra.mxu0 %v120
    %149 = vmatprep.subr.bf16.mxu0 0
    %150 = vmatpush2.bf16.msra.mxu0 0
    %151 = vmatprep.subr.bf16.mxu0 0
    %152 = vmatpush2.bf16.msra.mxu0 0
    %153 = vmatprep.subr.bf16.mxu0 0
    %154 = vmatpush2.bf16.msra.mxu0 0
    %155 = vmatprep.subr.bf16.mxu0 0
    %156 = vmatpush2.bf16.msra.mxu0 0
    %157 = vmatprep.subr.bf16.mxu0 0
    %158 = vmatpush2.bf16.msra.mxu0 0
    %159 = vmatprep.subr.bf16.mxu0 0
    %160 = vmatpush2.bf16.msra.mxu0 0
    %161 = vmatprep.subr.bf16.mxu0 0
    %162 = vmatpush2.bf16.msra.mxu0 0
    %163 = vmatprep.subr.bf16.mxu0 0
    %164 = vmatpush2.bf16.msra.mxu0 0
    %165 = vmatprep.mubr.bf16.mxu0 0
    %166 = vmatmul.mubr.bf16.gmra.mxu0 %v128
    %v167 = vpop.f32.mrf.mxu0
    %v168 = vadd.f32 %v107, %v167
    %v169 = vpop.f32.mrf.mxu0
    %v170 = vpop.f32.mrf.mxu0
    %v171 = vadd.f32 %v107, %v170
    %v172 = vpop.f32.mrf.mxu0
    %173 = vmatprep.mubr.bf16.mxu0 0
    %174 = vmatmul.mubr.bf16.gmra.mxu0 %v131
    %v175 = vpop.f32.mrf.mxu0
    %v176 = vadd.f32 %v107, %v175
    %v177 = vpop.f32.mrf.mxu0
    %v178 = vpop.f32.mrf.mxu0
    %v179 = vadd.f32 %v107, %v178
    %v180 = vpop.f32.mrf.mxu0
    %181 = vdwg.mxu0
    %vm182 = vcmask 523264
    %v183 = vsel %vm182, %v168, 0.0
    %v184 = vsel %vm182, %v171, 0.0
    %v185 = vadd.f32 %v183, %v184
    %v186 = vsel %vm182, %v176, 0.0
    %v187 = vadd.f32 %v185, %v186
    %v188 = vsel %vm182, %v179, 0.0
    %v189 = vadd.f32 %v187, %v188
    %v190 = vrot.slane %v189, 4
    %v191 = vadd.f32 %v189, %v190
    %v192 = vrot.slane %v191, 2
    %v193 = vadd.f32 %v191, %v192
    %v194 = vrot.slane %v193, 1
    %v195 = vadd.f32 %v193, %v194
    %v196 = vmul.f32 %v168, %v168
    %v197 = vmul.f32 %v171, %v171
    %v198 = vmul.f32 %v176, %v176
    %v199 = vmul.f32 %v179, %v179
    %v200 = vsel %vm182, %v196, 0.0
    %v201 = vsel %vm182, %v197, 0.0
    %v202 = vadd.f32 %v200, %v201
    %v203 = vsel %vm182, %v198, 0.0
    %v204 = vadd.f32 %v202, %v203
    %v205 = vsel %vm182, %v199, 0.0
    %v206 = vadd.f32 %v204, %v205
    %v207 = vrot.slane %v206, 4
    %v208 = vadd.f32 %v206, %v207
    %v209 = vrot.slane %v208, 2
    %v210 = vadd.f32 %v208, %v209
    %v211 = vrot.slane %v210, 1
    %v212 = vadd.f32 %v210, %v211
    %v213 = vmul.f32 %v195, 0.03125
    %v214 = vmul.f32 %v212, 0.03125
    %v215 = vmul.f32 %v213, %v213
    %v216 = vsub.f32 %v214, %v215
    %v217 = vadd.f32 %v216, 1e-05
    %v218 = vrsqrt.pop %v217
    %v219 = vmul.f32 %v218, %v94
    %v220 = vmul.f32 %v213, %v219
    %v221 = vsub.f32 %v95, %v220
    %v222 = vlaneseq
    %v223 = vshrl.u32 %v222, 7
    %v224 = vsub.s32 0, %v223
    %v225 = vrot.slane %v219, %v224
    %v226 = vmul.f32 %v168, %v225
    %v227 = vmul.f32 %v171, %v225
    %v228 = vmul.f32 %v176, %v225
    %v229 = vmul.f32 %v179, %v225
    %v230 = vlaneseq
    %v231 = vshrl.u32 %v230, 7
    %v232 = vsub.s32 0, %v231
    %v233 = vrot.slane %v221, %v232
    %v234 = vadd.f32 %v226, %v233
    %v235 = vadd.f32 %v227, %v233
    %v236 = vadd.f32 %v228, %v233
    %v237 = vadd.f32 %v229, %v233
    %v238 = vmul.f32 %v234, 0.5
    %v239 = vmul.f32 %v235, 0.5
    %v240 = vmul.f32 %v236, 0.5
    %v241 = vmul.f32 %v237, 0.5
    %v242 = vmul.f32 %v234, 0.70710677
    %v243 = vmul.f32 %v235, 0.70710677
    %v244 = vmul.f32 %v236, 0.70710677
    %v245 = vmul.f32 %v237, 0.70710677
    %vm246 = vcmp.ge.f32.partialorder %v242, 0.0
    %vm247 = vcmp.ge.f32.partialorder %v243, 0.0
    %vm248 = vcmp.ge.f32.partialorder %v244, 0.0
    %vm249 = vcmp.ge.f32.partialorder %v245, 0.0
    %v250 = vsel %vm246, 1.0, -1.0
    %v251 = vsel %vm247, 1.0, -1.0
    %v252 = vsel %vm248, 1.0, -1.0
    %v253 = vsel %vm249, 1.0, -1.0
    %v254 = vand.u32 2147483647, %v242
    %v255 = vand.u32 2147483647, %v243
    %v256 = vand.u32 2147483647, %v244
    %v257 = vand.u32 2147483647, %v245
    %v258 = vmul.f32 %v254, 0.3275911
    %v259 = vmul.f32 %v255, 0.3275911
    %v260 = vmul.f32 %v256, 0.3275911
    %v261 = vmul.f32 %v257, 0.3275911
    %v262 = vadd.f32 %v258, 1.0
    %v263 = vadd.f32 %v259, 1.0
    %v264 = vadd.f32 %v260, 1.0
    %v265 = vadd.f32 %v261, 1.0
    %v266 = vrcp.pop %v262
    %v267 = vrcp.pop %v263
    %v268 = vrcp.pop %v264
    %v269 = vrcp.pop %v265
    %v270 = vmul.f32 %v266, 1.0614054
    %v271 = vmul.f32 %v267, 1.0614054
    %v272 = vmul.f32 %v268, 1.0614054
    %v273 = vmul.f32 %v269, 1.0614054
    %v274 = vadd.f32 %v270, -1.4531521
    %v275 = vadd.f32 %v271, -1.4531521
    %v276 = vadd.f32 %v272, -1.4531521
    %v277 = vadd.f32 %v273, -1.4531521
    %v278 = vmul.f32 %v274, %v266
    %v279 = vmul.f32 %v275, %v267
    %v280 = vmul.f32 %v276, %v268
    %v281 = vmul.f32 %v277, %v269
    %v282 = vadd.f32 %v278, 1.4214138
    %v283 = vadd.f32 %v279, 1.4214138
    %v284 = vadd.f32 %v280, 1.4214138
    %v285 = vadd.f32 %v281, 1.4214138
    %v286 = vmul.f32 %v282, %v266
    %v287 = vmul.f32 %v283, %v267
    %v288 = vmul.f32 %v284, %v268
    %v289 = vmul.f32 %v285, %v269
    %v290 = vadd.f32 %v286, -0.28449672
    %v291 = vadd.f32 %v287, -0.28449672
    %v292 = vadd.f32 %v288, -0.28449672
    %v293 = vadd.f32 %v289, -0.28449672
    %v294 = vmul.f32 %v290, %v266
    %v295 = vmul.f32 %v291, %v267
    %v296 = vmul.f32 %v292, %v268
    %v297 = vmul.f32 %v293, %v269
    %v298 = vadd.f32 %v294, 0.2548296
    %v299 = vadd.f32 %v295, 0.2548296
    %v300 = vadd.f32 %v296, 0.2548296
    %v301 = vadd.f32 %v297, 0.2548296
    %v302 = vmul.f32 %v298, %v266
    %v303 = vmul.f32 %v299, %v267
    %v304 = vmul.f32 %v300, %v268
    %v305 = vmul.f32 %v301, %v269
    %v306 = vsub.f32 0.0, %v254
    %v307 = vsub.f32 0.0, %v255
    %v308 = vsub.f32 0.0, %v256
    %v309 = vsub.f32 0.0, %v257
    %v310 = vmul.f32 %v306, %v254
    %v311 = vmul.f32 %v307, %v255
    %v312 = vmul.f32 %v308, %v256
    %v313 = vmul.f32 %v309, %v257
    %v314 = vmul.f32 %v310, 1.442695
    %v315 = vpow.pop %v314
    %v316 = vmul.f32 %v311, 1.442695
    %v317 = vpow.pop %v316
    %v318 = vmul.f32 %v312, 1.442695
    %v319 = vpow.pop %v318
    %v320 = vmul.f32 %v313, 1.442695
    %v321 = vpow.pop %v320
    %v322 = vmul.f32 %v302, %v315
    %v323 = vmul.f32 %v303, %v317
    %v324 = vmul.f32 %v304, %v319
    %v325 = vmul.f32 %v305, %v321
    %v326 = vsub.f32 1.0, %v322
    %v327 = vsub.f32 1.0, %v323
    %v328 = vsub.f32 1.0, %v324
    %v329 = vsub.f32 1.0, %v325
    %v330 = vmul.f32 %v250, %v326
    %v331 = vmul.f32 %v251, %v327
    %v332 = vmul.f32 %v252, %v328
    %v333 = vmul.f32 %v253, %v329
    %v334 = vadd.f32 %v330, 1.0
    %v335 = vadd.f32 %v331, 1.0
    %v336 = vadd.f32 %v332, 1.0
    %v337 = vadd.f32 %v333, 1.0
    %v338 = vmul.f32 %v238, %v334
    %v339 = vmul.f32 %v239, %v335
    %v340 = vmul.f32 %v240, %v336
    %v341 = vmul.f32 %v241, %v337
    %v342 = vld [vmem:[#allocation8 + $0x3] sm:$0x1]
    %v343 = vld [vmem:[#allocation8 + $0x4] sm:$0x1]
    %v344 = vld [vmem:[#allocation8 + $0x5] sm:$0x1]
    %v345 = vld [vmem:[%s3] sm:$0xf]
    %v346 = vld [vmem:[%s3 + $0x4] sm:$0xf]
    %v347 = vld [vmem:[%s3 + $0x8] sm:$0xf]
    %v348 = vld [vmem:[%s3 + $0xc] sm:$0xf]
    %v349 = vld [vmem:[%s3 + $0x10] sm:$0xf]
    %v350 = vld [vmem:[%s3 + $0x14] sm:$0xf]
    %v351 = vld [vmem:[%s3 + $0x18] sm:$0xf]
    %v352 = vld [vmem:[%s3 + $0x1c] sm:$0xf]
    %v353 = vpack.c.bf16 %v339, %v338
    %v354 = vpack.c.bf16 %v341, %v340
    %v355 = vlaneseq
    %v356 = vshrl.u32 %v355, 7
    %v357 = vsub.s32 0, %v356
    %v358 = vrot.slane %v342, %v357
    %v367 = vunpack.c.l.b16 %v345
    %v368 = vunpack.c.l.b16 %v346
    %v369 = vunpack.c.l.b16 %v347
    %v370 = vunpack.c.l.b16 %v348
    %v371 = vunpack.c.l.b16 %v349
    %v372 = vunpack.c.l.b16 %v350
    %v373 = vunpack.c.l.b16 %v351
    %v374 = vunpack.c.l.b16 %v352
    %v375 = vpack.c.b16 %v368, %v367
    %v376 = vpack.c.b16 %v370, %v369
    %v377 = vpack.c.b16 %v372, %v371
    %v378 = vpack.c.b16 %v374, %v373
    %v384 = vsel %vm182, %v353, 0
    %v387 = vsel %vm182, %v354, 0
    %389 = vmatprep.subr.bf16.mxu0 0
    %390 = vmatpush1.bf16.msra.mxu0 0
    %391 = vmatprep.subr.bf16.mxu0 0
    %392 = vmatpush1.bf16.msra.mxu0 0
    %393 = vmatprep.subr.bf16.mxu0 0
    %394 = vmatpush1.bf16.msra.mxu0 0
    %395 = vmatprep.subr.bf16.mxu0 0
    %396 = vmatpush1.bf16.msra.mxu0 0
    %397 = vmatprep.subr.bf16.mxu0 0
    %398 = vmatpush1.bf16.msra.mxu0 %v378
    %399 = vmatprep.subr.bf16.mxu0 0
    %400 = vmatpush1.bf16.msra.mxu0 %v377
    %401 = vmatprep.subr.bf16.mxu0 0
    %402 = vmatpush1.bf16.msra.mxu0 %v376
    %403 = vmatprep.subr.bf16.mxu0 0
    %404 = vmatpush1.bf16.msra.mxu0 %v375
    %405 = vmatprep.subr.bf16.mxu0 0
    %406 = vmatpush2.bf16.msra.mxu0 0
    %407 = vmatprep.subr.bf16.mxu0 0
    %408 = vmatpush2.bf16.msra.mxu0 0
    %409 = vmatprep.subr.bf16.mxu0 0
    %410 = vmatpush2.bf16.msra.mxu0 0
    %411 = vmatprep.subr.bf16.mxu0 0
    %412 = vmatpush2.bf16.msra.mxu0 0
    %413 = vmatprep.subr.bf16.mxu0 0
    %414 = vmatpush2.bf16.msra.mxu0 0
    %415 = vmatprep.subr.bf16.mxu0 0
    %416 = vmatpush2.bf16.msra.mxu0 0
    %417 = vmatprep.subr.bf16.mxu0 0
    %418 = vmatpush2.bf16.msra.mxu0 0
    %419 = vmatprep.subr.bf16.mxu0 0
    %420 = vmatpush2.bf16.msra.mxu0 0
    %421 = vmatprep.mubr.bf16.mxu0 0
    %422 = vmatmul.mubr.bf16.gmra.mxu0 %v384
    %v423 = vpop.f32.mrf.mxu0
    %v424 = vadd.f32 %v358, %v423
    %v425 = vpop.f32.mrf.mxu0
    %v426 = vpop.f32.mrf.mxu0
    %v427 = vadd.f32 %v358, %v426
    %v428 = vpop.f32.mrf.mxu0
    %429 = vmatprep.mubr.bf16.mxu0 0
    %430 = vmatmul.mubr.bf16.gmra.mxu0 %v387
    %v431 = vpop.f32.mrf.mxu0
    %v432 = vadd.f32 %v358, %v431
    %v433 = vpop.f32.mrf.mxu0
    %v434 = vpop.f32.mrf.mxu0
    %v435 = vadd.f32 %v358, %v434
    %v436 = vpop.f32.mrf.mxu0
    %437 = vdwg.mxu0
    %vm438 = vcmask 261120
    %v439 = vsel %vm438, %v424, 0.0
    %v440 = vsel %vm438, %v427, 0.0
    %v441 = vadd.f32 %v439, %v440
    %v442 = vsel %vm438, %v432, 0.0
    %v443 = vadd.f32 %v441, %v442
    %v444 = vsel %vm438, %v435, 0.0
    %v445 = vadd.f32 %v443, %v444
    %v446 = vrot.slane %v445, 4
    %v447 = vadd.f32 %v445, %v446
    %v448 = vrot.slane %v447, 2
    %v449 = vadd.f32 %v447, %v448
    %v450 = vrot.slane %v449, 1
    %v451 = vadd.f32 %v449, %v450
    %v452 = vmul.f32 %v424, %v424
    %v453 = vmul.f32 %v427, %v427
    %v454 = vmul.f32 %v432, %v432
    %v455 = vmul.f32 %v435, %v435
    %v456 = vsel %vm438, %v452, 0.0
    %v457 = vsel %vm438, %v453, 0.0
    %v458 = vadd.f32 %v456, %v457
    %v459 = vsel %vm438, %v454, 0.0
    %v460 = vadd.f32 %v458, %v459
    %v461 = vsel %vm438, %v455, 0.0
    %v462 = vadd.f32 %v460, %v461
    %v463 = vrot.slane %v462, 4
    %v464 = vadd.f32 %v462, %v463
    %v465 = vrot.slane %v464, 2
    %v466 = vadd.f32 %v464, %v465
    %v467 = vrot.slane %v466, 1
    %v468 = vadd.f32 %v466, %v467
    %v469 = vmul.f32 %v451, 0.03125
    %v470 = vmul.f32 %v468, 0.03125
    %v471 = vmul.f32 %v469, %v469
    %v472 = vsub.f32 %v470, %v471
    %v473 = vadd.f32 %v472, 1e-05
    %v474 = vrsqrt.pop %v473
    %v475 = vmul.f32 %v474, %v343
    %v476 = vmul.f32 %v469, %v475
    %v477 = vsub.f32 %v344, %v476
    %v478 = vlaneseq
    %v479 = vshrl.u32 %v478, 7
    %v480 = vsub.s32 0, %v479
    %v481 = vrot.slane %v475, %v480
    %v482 = vmul.f32 %v424, %v481
    %v483 = vmul.f32 %v427, %v481
    %v484 = vmul.f32 %v432, %v481
    %v485 = vmul.f32 %v435, %v481
    %v486 = vlaneseq
    %v487 = vshrl.u32 %v486, 7
    %v488 = vsub.s32 0, %v487
    %v489 = vrot.slane %v477, %v488
    %v490 = vadd.f32 %v482, %v489
    %v491 = vadd.f32 %v483, %v489
    %v492 = vadd.f32 %v484, %v489
    %v493 = vadd.f32 %v485, %v489
    %v494 = vmul.f32 %v490, 0.5
    %v495 = vmul.f32 %v491, 0.5
    %v496 = vmul.f32 %v492, 0.5
    %v497 = vmul.f32 %v493, 0.5
    %v498 = vmul.f32 %v490, 0.70710677
    %v499 = vmul.f32 %v491, 0.70710677
    %v500 = vmul.f32 %v492, 0.70710677
    %v501 = vmul.f32 %v493, 0.70710677
    %vm502 = vcmp.ge.f32.partialorder %v498, 0.0
    %vm503 = vcmp.ge.f32.partialorder %v499, 0.0
    %vm504 = vcmp.ge.f32.partialorder %v500, 0.0
    %vm505 = vcmp.ge.f32.partialorder %v501, 0.0
    %v506 = vsel %vm502, 1.0, -1.0
    %v507 = vsel %vm503, 1.0, -1.0
    %v508 = vsel %vm504, 1.0, -1.0
    %v509 = vsel %vm505, 1.0, -1.0
    %v510 = vand.u32 2147483647, %v498
    %v511 = vand.u32 2147483647, %v499
    %v512 = vand.u32 2147483647, %v500
    %v513 = vand.u32 2147483647, %v501
    %v514 = vmul.f32 %v510, 0.3275911
    %v515 = vmul.f32 %v511, 0.3275911
    %v516 = vmul.f32 %v512, 0.3275911
    %v517 = vmul.f32 %v513, 0.3275911
    %v518 = vadd.f32 %v514, 1.0
    %v519 = vadd.f32 %v515, 1.0
    %v520 = vadd.f32 %v516, 1.0
    %v521 = vadd.f32 %v517, 1.0
    %v522 = vrcp.pop %v518
    %v523 = vrcp.pop %v519
    %v524 = vrcp.pop %v520
    %v525 = vrcp.pop %v521
    %v526 = vmul.f32 %v522, 1.0614054
    %v527 = vmul.f32 %v523, 1.0614054
    %v528 = vmul.f32 %v524, 1.0614054
    %v529 = vmul.f32 %v525, 1.0614054
    %v530 = vadd.f32 %v526, -1.4531521
    %v531 = vadd.f32 %v527, -1.4531521
    %v532 = vadd.f32 %v528, -1.4531521
    %v533 = vadd.f32 %v529, -1.4531521
    %v534 = vmul.f32 %v530, %v522
    %v535 = vmul.f32 %v531, %v523
    %v536 = vmul.f32 %v532, %v524
    %v537 = vmul.f32 %v533, %v525
    %v538 = vadd.f32 %v534, 1.4214138
    %v539 = vadd.f32 %v535, 1.4214138
    %v540 = vadd.f32 %v536, 1.4214138
    %v541 = vadd.f32 %v537, 1.4214138
    %v542 = vmul.f32 %v538, %v522
    %v543 = vmul.f32 %v539, %v523
    %v544 = vmul.f32 %v540, %v524
    %v545 = vmul.f32 %v541, %v525
    %v546 = vadd.f32 %v542, -0.28449672
    %v547 = vadd.f32 %v543, -0.28449672
    %v548 = vadd.f32 %v544, -0.28449672
    %v549 = vadd.f32 %v545, -0.28449672
    %v550 = vmul.f32 %v546, %v522
    %v551 = vmul.f32 %v547, %v523
    %v552 = vmul.f32 %v548, %v524
    %v553 = vmul.f32 %v549, %v525
    %v554 = vadd.f32 %v550, 0.2548296
    %v555 = vadd.f32 %v551, 0.2548296
    %v556 = vadd.f32 %v552, 0.2548296
    %v557 = vadd.f32 %v553, 0.2548296
    %v558 = vmul.f32 %v554, %v522
    %v559 = vmul.f32 %v555, %v523
    %v560 = vmul.f32 %v556, %v524
    %v561 = vmul.f32 %v557, %v525
    %v562 = vsub.f32 0.0, %v510
    %v563 = vsub.f32 0.0, %v511
    %v564 = vsub.f32 0.0, %v512
    %v565 = vsub.f32 0.0, %v513
    %v566 = vmul.f32 %v562, %v510
    %v567 = vmul.f32 %v563, %v511
    %v568 = vmul.f32 %v564, %v512
    %v569 = vmul.f32 %v565, %v513
    %v570 = vmul.f32 %v566, 1.442695
    %v571 = vpow.pop %v570
    %v572 = vmul.f32 %v567, 1.442695
    %v573 = vpow.pop %v572
    %v574 = vmul.f32 %v568, 1.442695
    %v575 = vpow.pop %v574
    %v576 = vmul.f32 %v569, 1.442695
    %v577 = vpow.pop %v576
    %v578 = vmul.f32 %v558, %v571
    %v579 = vmul.f32 %v559, %v573
    %v580 = vmul.f32 %v560, %v575
    %v581 = vmul.f32 %v561, %v577
    %v582 = vsub.f32 1.0, %v578
    %v583 = vsub.f32 1.0, %v579
    %v584 = vsub.f32 1.0, %v580
    %v585 = vsub.f32 1.0, %v581
    %v586 = vmul.f32 %v506, %v582
    %v587 = vmul.f32 %v507, %v583
    %v588 = vmul.f32 %v508, %v584
    %v589 = vmul.f32 %v509, %v585
    %v590 = vadd.f32 %v586, 1.0
    %v591 = vadd.f32 %v587, 1.0
    %v592 = vadd.f32 %v588, 1.0
    %v593 = vadd.f32 %v589, 1.0
    %v594 = vmul.f32 %v494, %v590
    %v595 = vmul.f32 %v495, %v591
    %v596 = vmul.f32 %v496, %v592
    %v597 = vmul.f32 %v497, %v593
    %v598 = vld [vmem:[#allocation8 + $0x6] sm:$0x1]
    %v599 = vld [vmem:[#allocation8 + $0x7] sm:$0x1]
    %v600 = vld [vmem:[#allocation8 + $0x8] sm:$0x1]
    %v601 = vld [vmem:[%s4] sm:$0xf]
    %v602 = vld [vmem:[%s4 + $0x4] sm:$0xf]
    %v603 = vld [vmem:[%s4 + $0x8] sm:$0xf]
    %v604 = vld [vmem:[%s4 + $0xc] sm:$0xf]
    %v605 = vpack.c.bf16 %v595, %v594
    %v606 = vpack.c.bf16 %v597, %v596
    %v607 = vlaneseq
    %v608 = vshrl.u32 %v607, 7
    %v609 = vsub.s32 0, %v608
    %v610 = vrot.slane %v598, %v609
    %v615 = vunpack.c.l.b16 %v601
    %v616 = vunpack.c.l.b16 %v602
    %v617 = vunpack.c.l.b16 %v603
    %v618 = vunpack.c.l.b16 %v604
    %v619 = vpack.c.b16 %v616, %v615
    %v620 = vpack.c.b16 %v618, %v617
    %v624 = vsel %vm438, %v605, 0
    %v627 = vsel %vm438, %v606, 0
    %629 = vmatprep.subr.bf16.mxu0 0
    %630 = vmatpush1.bf16.msra.mxu0 0
    %631 = vmatprep.subr.bf16.mxu0 0
    %632 = vmatpush1.bf16.msra.mxu0 0
    %633 = vmatprep.subr.bf16.mxu0 0
    %634 = vmatpush1.bf16.msra.mxu0 0
    %635 = vmatprep.subr.bf16.mxu0 0
    %636 = vmatpush1.bf16.msra.mxu0 0
    %637 = vmatprep.subr.bf16.mxu0 0
    %638 = vmatpush1.bf16.msra.mxu0 0
    %639 = vmatprep.subr.bf16.mxu0 0
    %640 = vmatpush1.bf16.msra.mxu0 0
    %641 = vmatprep.subr.bf16.mxu0 0
    %642 = vmatpush1.bf16.msra.mxu0 %v620
    %643 = vmatprep.subr.bf16.mxu0 0
    %644 = vmatpush1.bf16.msra.mxu0 %v619
    %645 = vmatprep.subr.bf16.mxu0 0
    %646 = vmatpush2.bf16.msra.mxu0 0
    %647 = vmatprep.subr.bf16.mxu0 0
    %648 = vmatpush2.bf16.msra.mxu0 0
    %649 = vmatprep.subr.bf16.mxu0 0
    %650 = vmatpush2.bf16.msra.mxu0 0
    %651 = vmatprep.subr.bf16.mxu0 0
    %652 = vmatpush2.bf16.msra.mxu0 0
    %653 = vmatprep.subr.bf16.mxu0 0
    %654 = vmatpush2.bf16.msra.mxu0 0
    %655 = vmatprep.subr.bf16.mxu0 0
    %656 = vmatpush2.bf16.msra.mxu0 0
    %657 = vmatprep.subr.bf16.mxu0 0
    %658 = vmatpush2.bf16.msra.mxu0 0
    %659 = vmatprep.subr.bf16.mxu0 0
    %660 = vmatpush2.bf16.msra.mxu0 0
    %661 = vmatprep.mubr.bf16.mxu0 0
    %662 = vmatmul.mubr.bf16.gmra.mxu0 %v624
    %v663 = vpop.f32.mrf.mxu0
    %v664 = vadd.f32 %v610, %v663
    %v665 = vpop.f32.mrf.mxu0
    %v666 = vpop.f32.mrf.mxu0
    %v667 = vadd.f32 %v610, %v666
    %v668 = vpop.f32.mrf.mxu0
    %669 = vmatprep.mubr.bf16.mxu0 0
    %670 = vmatmul.mubr.bf16.gmra.mxu0 %v627
    %v671 = vpop.f32.mrf.mxu0
    %v672 = vadd.f32 %v610, %v671
    %v673 = vpop.f32.mrf.mxu0
    %v674 = vpop.f32.mrf.mxu0
    %v675 = vadd.f32 %v610, %v674
    %v676 = vpop.f32.mrf.mxu0
    %677 = vdwg.mxu0
    %vm678 = vcmask 130048
    %v679 = vsel %vm678, %v664, 0.0
    %v680 = vsel %vm678, %v667, 0.0
    %v681 = vadd.f32 %v679, %v680
    %v682 = vsel %vm678, %v672, 0.0
    %v683 = vadd.f32 %v681, %v682
    %v684 = vsel %vm678, %v675, 0.0
    %v685 = vadd.f32 %v683, %v684
    %v686 = vrot.slane %v685, 4
    %v687 = vadd.f32 %v685, %v686
    %v688 = vrot.slane %v687, 2
    %v689 = vadd.f32 %v687, %v688
    %v690 = vrot.slane %v689, 1
    %v691 = vadd.f32 %v689, %v690
    %v692 = vmul.f32 %v664, %v664
    %v693 = vmul.f32 %v667, %v667
    %v694 = vmul.f32 %v672, %v672
    %v695 = vmul.f32 %v675, %v675
    %v696 = vsel %vm678, %v692, 0.0
    %v697 = vsel %vm678, %v693, 0.0
    %v698 = vadd.f32 %v696, %v697
    %v699 = vsel %vm678, %v694, 0.0
    %v700 = vadd.f32 %v698, %v699
    %v701 = vsel %vm678, %v695, 0.0
    %v702 = vadd.f32 %v700, %v701
    %v703 = vrot.slane %v702, 4
    %v704 = vadd.f32 %v702, %v703
    %v705 = vrot.slane %v704, 2
    %v706 = vadd.f32 %v704, %v705
    %v707 = vrot.slane %v706, 1
    %v708 = vadd.f32 %v706, %v707
    %v709 = vmul.f32 %v691, 0.03125
    %v710 = vmul.f32 %v708, 0.03125
    %v711 = vmul.f32 %v709, %v709
    %v712 = vsub.f32 %v710, %v711
    %v713 = vadd.f32 %v712, 1e-05
    %v714 = vrsqrt.pop %v713
    %v715 = vmul.f32 %v714, %v599
    %v716 = vmul.f32 %v709, %v715
    %v717 = vsub.f32 %v600, %v716
    %v718 = vlaneseq
    %v719 = vshrl.u32 %v718, 7
    %v720 = vsub.s32 0, %v719
    %v721 = vrot.slane %v715, %v720
    %v722 = vmul.f32 %v664, %v721
    %v723 = vmul.f32 %v667, %v721
    %v724 = vmul.f32 %v672, %v721
    %v725 = vmul.f32 %v675, %v721
    %v726 = vlaneseq
    %v727 = vshrl.u32 %v726, 7
    %v728 = vsub.s32 0, %v727
    %v729 = vrot.slane %v717, %v728
    %v730 = vadd.f32 %v722, %v729
    %v731 = vadd.f32 %v723, %v729
    %v732 = vadd.f32 %v724, %v729
    %v733 = vadd.f32 %v725, %v729
    %v734 = vmul.f32 %v730, 0.5
    %v735 = vmul.f32 %v731, 0.5
    %v736 = vmul.f32 %v732, 0.5
    %v737 = vmul.f32 %v733, 0.5
    %v738 = vmul.f32 %v730, 0.70710677
    %v739 = vmul.f32 %v731, 0.70710677
    %v740 = vmul.f32 %v732, 0.70710677
    %v741 = vmul.f32 %v733, 0.70710677
    %vm742 = vcmp.ge.f32.partialorder %v738, 0.0
    %vm743 = vcmp.ge.f32.partialorder %v739, 0.0
    %vm744 = vcmp.ge.f32.partialorder %v740, 0.0
    %vm745 = vcmp.ge.f32.partialorder %v741, 0.0
    %v746 = vsel %vm742, 1.0, -1.0
    %v747 = vsel %vm743, 1.0, -1.0
    %v748 = vsel %vm744, 1.0, -1.0
    %v749 = vsel %vm745, 1.0, -1.0
    %v750 = vand.u32 2147483647, %v738
    %v751 = vand.u32 2147483647, %v739
    %v752 = vand.u32 2147483647, %v740
    %v753 = vand.u32 2147483647, %v741
    %v754 = vmul.f32 %v750, 0.3275911
    %v755 = vmul.f32 %v751, 0.3275911
    %v756 = vmul.f32 %v752, 0.3275911
    %v757 = vmul.f32 %v753, 0.3275911
    %v758 = vadd.f32 %v754, 1.0
    %v759 = vadd.f32 %v755, 1.0
    %v760 = vadd.f32 %v756, 1.0
    %v761 = vadd.f32 %v757, 1.0
    %v762 = vrcp.pop %v758
    %v763 = vrcp.pop %v759
    %v764 = vrcp.pop %v760
    %v765 = vrcp.pop %v761
    %v766 = vmul.f32 %v762, 1.0614054
    %v767 = vmul.f32 %v763, 1.0614054
    %v768 = vmul.f32 %v764, 1.0614054
    %v769 = vmul.f32 %v765, 1.0614054
    %v770 = vadd.f32 %v766, -1.4531521
    %v771 = vadd.f32 %v767, -1.4531521
    %v772 = vadd.f32 %v768, -1.4531521
    %v773 = vadd.f32 %v769, -1.4531521
    %v774 = vmul.f32 %v770, %v762
    %v775 = vmul.f32 %v771, %v763
    %v776 = vmul.f32 %v772, %v764
    %v777 = vmul.f32 %v773, %v765
    %v778 = vadd.f32 %v774, 1.4214138
    %v779 = vadd.f32 %v775, 1.4214138
    %v780 = vadd.f32 %v776, 1.4214138
    %v781 = vadd.f32 %v777, 1.4214138
    %v782 = vmul.f32 %v778, %v762
    %v783 = vmul.f32 %v779, %v763
    %v784 = vmul.f32 %v780, %v764
    %v785 = vmul.f32 %v781, %v765
    %v786 = vadd.f32 %v782, -0.28449672
    %v787 = vadd.f32 %v783, -0.28449672
    %v788 = vadd.f32 %v784, -0.28449672
    %v789 = vadd.f32 %v785, -0.28449672
    %v790 = vmul.f32 %v786, %v762
    %v791 = vmul.f32 %v787, %v763
    %v792 = vmul.f32 %v788, %v764
    %v793 = vmul.f32 %v789, %v765
    %v794 = vadd.f32 %v790, 0.2548296
    %v795 = vadd.f32 %v791, 0.2548296
    %v796 = vadd.f32 %v792, 0.2548296
    %v797 = vadd.f32 %v793, 0.2548296
    %v798 = vmul.f32 %v794, %v762
    %v799 = vmul.f32 %v795, %v763
    %v800 = vmul.f32 %v796, %v764
    %v801 = vmul.f32 %v797, %v765
    %v802 = vsub.f32 0.0, %v750
    %v803 = vsub.f32 0.0, %v751
    %v804 = vsub.f32 0.0, %v752
    %v805 = vsub.f32 0.0, %v753
    %v806 = vmul.f32 %v802, %v750
    %v807 = vmul.f32 %v803, %v751
    %v808 = vmul.f32 %v804, %v752
    %v809 = vmul.f32 %v805, %v753
    %v810 = vmul.f32 %v806, 1.442695
    %v811 = vpow.pop %v810
    %v812 = vmul.f32 %v807, 1.442695
    %v813 = vpow.pop %v812
    %v814 = vmul.f32 %v808, 1.442695
    %v815 = vpow.pop %v814
    %v816 = vmul.f32 %v809, 1.442695
    %v817 = vpow.pop %v816
    %v818 = vmul.f32 %v798, %v811
    %v819 = vmul.f32 %v799, %v813
    %v820 = vmul.f32 %v800, %v815
    %v821 = vmul.f32 %v801, %v817
    %v822 = vsub.f32 1.0, %v818
    %v823 = vsub.f32 1.0, %v819
    %v824 = vsub.f32 1.0, %v820
    %v825 = vsub.f32 1.0, %v821
    %v826 = vmul.f32 %v746, %v822
    %v827 = vmul.f32 %v747, %v823
    %v828 = vmul.f32 %v748, %v824
    %v829 = vmul.f32 %v749, %v825
    %v830 = vadd.f32 %v826, 1.0
    %v831 = vadd.f32 %v827, 1.0
    %v832 = vadd.f32 %v828, 1.0
    %v833 = vadd.f32 %v829, 1.0
    %v834 = vmul.f32 %v734, %v830
    %v835 = vmul.f32 %v735, %v831
    %v836 = vmul.f32 %v736, %v832
    %v837 = vmul.f32 %v737, %v833
    %v838 = vld [vmem:[#allocation8 + $0x9] sm:$0x1]
    %v839 = vld [vmem:[#allocation8 + $0xa] sm:$0x1]
    %v840 = vld [vmem:[#allocation8 + $0xb] sm:$0x1]
    %v841 = vld [vmem:[#allocation7] sm:$0xf]
    %v842 = vld [vmem:[#allocation7 + $0x4] sm:$0xf]
    %v843 = vpack.c.bf16 %v835, %v834
    %v844 = vpack.c.bf16 %v837, %v836
    %v845 = vlaneseq
    %v846 = vshrl.u32 %v845, 7
    %v847 = vsub.s32 0, %v846
    %v848 = vrot.slane %v838, %v847
    %v851 = vunpack.c.l.b16 %v841
    %v852 = vunpack.c.l.b16 %v842
    %v853 = vpack.c.b16 %v852, %v851
    %v856 = vsel %vm678, %v843, 0
    %v859 = vsel %vm678, %v844, 0
    %861 = vmatprep.subr.bf16.mxu0 0
    %862 = vmatpush1.bf16.msra.mxu0 0
    %863 = vmatprep.subr.bf16.mxu0 0
    %864 = vmatpush1.bf16.msra.mxu0 0
    %865 = vmatprep.subr.bf16.mxu0 0
    %866 = vmatpush1.bf16.msra.mxu0 0
    %867 = vmatprep.subr.bf16.mxu0 0
    %868 = vmatpush1.bf16.msra.mxu0 0
    %869 = vmatprep.subr.bf16.mxu0 0
    %870 = vmatpush1.bf16.msra.mxu0 0
    %871 = vmatprep.subr.bf16.mxu0 0
    %872 = vmatpush1.bf16.msra.mxu0 0
    %873 = vmatprep.subr.bf16.mxu0 0
    %874 = vmatpush1.bf16.msra.mxu0 0
    %875 = vmatprep.subr.bf16.mxu0 0
    %876 = vmatpush1.bf16.msra.mxu0 %v853
    %877 = vmatprep.subr.bf16.mxu0 0
    %878 = vmatpush2.bf16.msra.mxu0 0
    %879 = vmatprep.subr.bf16.mxu0 0
    %880 = vmatpush2.bf16.msra.mxu0 0
    %881 = vmatprep.subr.bf16.mxu0 0
    %882 = vmatpush2.bf16.msra.mxu0 0
    %883 = vmatprep.subr.bf16.mxu0 0
    %884 = vmatpush2.bf16.msra.mxu0 0
    %885 = vmatprep.subr.bf16.mxu0 0
    %886 = vmatpush2.bf16.msra.mxu0 0
    %887 = vmatprep.subr.bf16.mxu0 0
    %888 = vmatpush2.bf16.msra.mxu0 0
    %889 = vmatprep.subr.bf16.mxu0 0
    %890 = vmatpush2.bf16.msra.mxu0 0
    %891 = vmatprep.subr.bf16.mxu0 0
    %892 = vmatpush2.bf16.msra.mxu0 0
    %893 = vmatprep.mubr.bf16.mxu0 0
    %894 = vmatmul.mubr.bf16.gmra.mxu0 %v856
    %v895 = vpop.f32.mrf.mxu0
    %v896 = vadd.f32 %v848, %v895
    %v897 = vpop.f32.mrf.mxu0
    %v898 = vpop.f32.mrf.mxu0
    %v899 = vadd.f32 %v848, %v898
    %v900 = vpop.f32.mrf.mxu0
    %901 = vmatprep.mubr.bf16.mxu0 0
    %902 = vmatmul.mubr.bf16.gmra.mxu0 %v859
    %v903 = vpop.f32.mrf.mxu0
    %v904 = vadd.f32 %v848, %v903
    %v905 = vpop.f32.mrf.mxu0
    %v906 = vpop.f32.mrf.mxu0
    %v907 = vadd.f32 %v848, %v906
    %v908 = vpop.f32.mrf.mxu0
    %909 = vdwg.mxu0
    %v910 = vsel %vm438, %v896, 0.0
    %v911 = vsel %vm438, %v899, 0.0
    %v912 = vadd.f32 %v910, %v911
    %v913 = vsel %vm438, %v904, 0.0
    %v914 = vadd.f32 %v912, %v913
    %v915 = vsel %vm438, %v907, 0.0
    %v916 = vadd.f32 %v914, %v915
    %v917 = vrot.slane %v916, 4
    %v918 = vadd.f32 %v916, %v917
    %v919 = vrot.slane %v918, 2
    %v920 = vadd.f32 %v918, %v919
    %v921 = vrot.slane %v920, 1
    %v922 = vadd.f32 %v920, %v921
    %v923 = vmul.f32 %v896, %v896
    %v924 = vmul.f32 %v899, %v899
    %v925 = vmul.f32 %v904, %v904
    %v926 = vmul.f32 %v907, %v907
    %v927 = vsel %vm438, %v923, 0.0
    %v928 = vsel %vm438, %v924, 0.0
    %v929 = vadd.f32 %v927, %v928
    %v930 = vsel %vm438, %v925, 0.0
    %v931 = vadd.f32 %v929, %v930
    %v932 = vsel %vm438, %v926, 0.0
    %v933 = vadd.f32 %v931, %v932
    %v934 = vrot.slane %v933, 4
    %v935 = vadd.f32 %v933, %v934
    %v936 = vrot.slane %v935, 2
    %v937 = vadd.f32 %v935, %v936
    %v938 = vrot.slane %v937, 1
    %v939 = vadd.f32 %v937, %v938
    %v940 = vmul.f32 %v922, 0.03125
    %v941 = vmul.f32 %v939, 0.03125
    %v942 = vmul.f32 %v940, %v940
    %v943 = vsub.f32 %v941, %v942
    %v944 = vadd.f32 %v943, 1e-05
    %v945 = vrsqrt.pop %v944
    %v946 = vmul.f32 %v945, %v839
    %v947 = vmul.f32 %v940, %v946
    %v948 = vsub.f32 %v840, %v947
    %v949 = vlaneseq
    %v950 = vshrl.u32 %v949, 7
    %v951 = vsub.s32 0, %v950
    %v952 = vrot.slane %v946, %v951
    %v953 = vmul.f32 %v896, %v952
    %v954 = vmul.f32 %v899, %v952
    %v955 = vmul.f32 %v904, %v952
    %v956 = vmul.f32 %v907, %v952
    %v957 = vlaneseq
    %v958 = vshrl.u32 %v957, 7
    %v959 = vsub.s32 0, %v958
    %v960 = vrot.slane %v948, %v959
    %v961 = vadd.f32 %v953, %v960
    %v962 = vadd.f32 %v954, %v960
    %v963 = vadd.f32 %v955, %v960
    %v964 = vadd.f32 %v956, %v960
    %v965 = vmul.f32 %v961, 0.5
    %v966 = vmul.f32 %v962, 0.5
    %v967 = vmul.f32 %v963, 0.5
    %v968 = vmul.f32 %v964, 0.5
    %v969 = vmul.f32 %v961, 0.70710677
    %v970 = vmul.f32 %v962, 0.70710677
    %v971 = vmul.f32 %v963, 0.70710677
    %v972 = vmul.f32 %v964, 0.70710677
    %vm973 = vcmp.ge.f32.partialorder %v969, 0.0
    %vm974 = vcmp.ge.f32.partialorder %v970, 0.0
    %vm975 = vcmp.ge.f32.partialorder %v971, 0.0
    %vm976 = vcmp.ge.f32.partialorder %v972, 0.0
    %v977 = vsel %vm973, 1.0, -1.0
    %v978 = vsel %vm974, 1.0, -1.0
    %v979 = vsel %vm975, 1.0, -1.0
    %v980 = vsel %vm976, 1.0, -1.0
    %v981 = vand.u32 2147483647, %v969
    %v982 = vand.u32 2147483647, %v970
    %v983 = vand.u32 2147483647, %v971
    %v984 = vand.u32 2147483647, %v972
    %v985 = vmul.f32 %v981, 0.3275911
    %v986 = vmul.f32 %v982, 0.3275911
    %v987 = vmul.f32 %v983, 0.3275911
    %v988 = vmul.f32 %v984, 0.3275911
    %v989 = vadd.f32 %v985, 1.0
    %v990 = vadd.f32 %v986, 1.0
    %v991 = vadd.f32 %v987, 1.0
    %v992 = vadd.f32 %v988, 1.0
    %v993 = vrcp.pop %v989
    %v994 = vrcp.pop %v990
    %v995 = vrcp.pop %v991
    %v996 = vrcp.pop %v992
    %v997 = vmul.f32 %v993, 1.0614054
    %v998 = vmul.f32 %v994, 1.0614054
    %v999 = vmul.f32 %v995, 1.0614054
    %v1000 = vmul.f32 %v996, 1.0614054
    %v1001 = vadd.f32 %v997, -1.4531521
    %v1002 = vadd.f32 %v998, -1.4531521
    %v1003 = vadd.f32 %v999, -1.4531521
    %v1004 = vadd.f32 %v1000, -1.4531521
    %v1005 = vmul.f32 %v1001, %v993
    %v1006 = vmul.f32 %v1002, %v994
    %v1007 = vmul.f32 %v1003, %v995
    %v1008 = vmul.f32 %v1004, %v996
    %v1009 = vadd.f32 %v1005, 1.4214138
    %v1010 = vadd.f32 %v1006, 1.4214138
    %v1011 = vadd.f32 %v1007, 1.4214138
    %v1012 = vadd.f32 %v1008, 1.4214138
    %v1013 = vmul.f32 %v1009, %v993
    %v1014 = vmul.f32 %v1010, %v994
    %v1015 = vmul.f32 %v1011, %v995
    %v1016 = vmul.f32 %v1012, %v996
    %v1017 = vadd.f32 %v1013, -0.28449672
    %v1018 = vadd.f32 %v1014, -0.28449672
    %v1019 = vadd.f32 %v1015, -0.28449672
    %v1020 = vadd.f32 %v1016, -0.28449672
    %v1021 = vmul.f32 %v1017, %v993
    %v1022 = vmul.f32 %v1018, %v994
    %v1023 = vmul.f32 %v1019, %v995
    %v1024 = vmul.f32 %v1020, %v996
    %v1025 = vadd.f32 %v1021, 0.2548296
    %v1026 = vadd.f32 %v1022, 0.2548296
    %v1027 = vadd.f32 %v1023, 0.2548296
    %v1028 = vadd.f32 %v1024, 0.2548296
    %v1029 = vmul.f32 %v1025, %v993
    %v1030 = vmul.f32 %v1026, %v994
    %v1031 = vmul.f32 %v1027, %v995
    %v1032 = vmul.f32 %v1028, %v996
    %v1033 = vsub.f32 0.0, %v981
    %v1034 = vsub.f32 0.0, %v982
    %v1035 = vsub.f32 0.0, %v983
    %v1036 = vsub.f32 0.0, %v984
    %v1037 = vmul.f32 %v1033, %v981
    %v1038 = vmul.f32 %v1034, %v982
    %v1039 = vmul.f32 %v1035, %v983
    %v1040 = vmul.f32 %v1036, %v984
    %v1041 = vmul.f32 %v1037, 1.442695
    %v1042 = vpow.pop %v1041
    %v1043 = vmul.f32 %v1038, 1.442695
    %v1044 = vpow.pop %v1043
    %v1045 = vmul.f32 %v1039, 1.442695
    %v1046 = vpow.pop %v1045
    %v1047 = vmul.f32 %v1040, 1.442695
    %v1048 = vpow.pop %v1047
    %v1049 = vmul.f32 %v1029, %v1042
    %v1050 = vmul.f32 %v1030, %v1044
    %v1051 = vmul.f32 %v1031, %v1046
    %v1052 = vmul.f32 %v1032, %v1048
    %v1053 = vsub.f32 1.0, %v1049
    %v1054 = vsub.f32 1.0, %v1050
    %v1055 = vsub.f32 1.0, %v1051
    %v1056 = vsub.f32 1.0, %v1052
    %v1057 = vmul.f32 %v977, %v1053
    %v1058 = vmul.f32 %v978, %v1054
    %v1059 = vmul.f32 %v979, %v1055
    %v1060 = vmul.f32 %v980, %v1056
    %v1061 = vadd.f32 %v1057, 1.0
    %v1062 = vadd.f32 %v1058, 1.0
    %v1063 = vadd.f32 %v1059, 1.0
    %v1064 = vadd.f32 %v1060, 1.0
    %v1065 = vmul.f32 %v965, %v1061
    %v1066 = vmul.f32 %v966, %v1062
    %v1067 = vmul.f32 %v967, %v1063
    %v1068 = vmul.f32 %v968, %v1064
    %v1069 = vld [vmem:[#allocation8 + $0xc] sm:$0x1]
    %v1070 = vld [vmem:[#allocation8 + $0xd] sm:$0x1]
    %v1071 = vld [vmem:[#allocation8 + $0xe] sm:$0x1]
    %v1072 = vld [vmem:[%s6] sm:$0xf]
    %v1073 = vld [vmem:[%s6 + $0x4] sm:$0xf]
    %v1074 = vld [vmem:[%s6 + $0x8] sm:$0xf]
    %v1075 = vld [vmem:[%s6 + $0xc] sm:$0xf]
    %v1076 = vpack.c.bf16 %v1066, %v1065
    %v1077 = vpack.c.bf16 %v1068, %v1067
    %v1078 = vlaneseq
    %v1079 = vshrl.u32 %v1078, 7
    %v1080 = vsub.s32 0, %v1079
    %v1081 = vrot.slane %v1069, %v1080
    %v1086 = vunpack.c.l.b16 %v1072
    %v1087 = vunpack.c.l.b16 %v1073
    %v1088 = vunpack.c.l.b16 %v1074
    %v1089 = vunpack.c.l.b16 %v1075
    %v1090 = vpack.c.b16 %v1087, %v1086
    %v1091 = vpack.c.b16 %v1089, %v1088
    %v1095 = vsel %vm438, %v1076, 0
    %v1098 = vsel %vm438, %v1077, 0
    %1100 = vmatprep.subr.bf16.mxu0 0
    %1101 = vmatpush1.bf16.msra.mxu0 0
    %1102 = vmatprep.subr.bf16.mxu0 0
    %1103 = vmatpush1.bf16.msra.mxu0 0
    %1104 = vmatprep.subr.bf16.mxu0 0
    %1105 = vmatpush1.bf16.msra.mxu0 0
    %1106 = vmatprep.subr.bf16.mxu0 0
    %1107 = vmatpush1.bf16.msra.mxu0 0
    %1108 = vmatprep.subr.bf16.mxu0 0
    %1109 = vmatpush1.bf16.msra.mxu0 0
    %1110 = vmatprep.subr.bf16.mxu0 0
    %1111 = vmatpush1.bf16.msra.mxu0 0
    %1112 = vmatprep.subr.bf16.mxu0 0
    %1113 = vmatpush1.bf16.msra.mxu0 %v1091
    %1114 = vmatprep.subr.bf16.mxu0 0
    %1115 = vmatpush1.bf16.msra.mxu0 %v1090
    %1116 = vmatprep.subr.bf16.mxu0 0
    %1117 = vmatpush2.bf16.msra.mxu0 0
    %1118 = vmatprep.subr.bf16.mxu0 0
    %1119 = vmatpush2.bf16.msra.mxu0 0
    %1120 = vmatprep.subr.bf16.mxu0 0
    %1121 = vmatpush2.bf16.msra.mxu0 0
    %1122 = vmatprep.subr.bf16.mxu0 0
    %1123 = vmatpush2.bf16.msra.mxu0 0
    %1124 = vmatprep.subr.bf16.mxu0 0
    %1125 = vmatpush2.bf16.msra.mxu0 0
    %1126 = vmatprep.subr.bf16.mxu0 0
    %1127 = vmatpush2.bf16.msra.mxu0 0
    %1128 = vmatprep.subr.bf16.mxu0 0
    %1129 = vmatpush2.bf16.msra.mxu0 0
    %1130 = vmatprep.subr.bf16.mxu0 0
    %1131 = vmatpush2.bf16.msra.mxu0 0
    %1132 = vmatprep.mubr.bf16.mxu0 0
    %1133 = vmatmul.mubr.bf16.gmra.mxu0 %v1095
    %v1134 = vpop.f32.mrf.mxu0
    %v1135 = vadd.f32 %v1081, %v1134
    %v1136 = vpop.f32.mrf.mxu0
    %v1137 = vpop.f32.mrf.mxu0
    %v1138 = vadd.f32 %v1081, %v1137
    %v1139 = vpop.f32.mrf.mxu0
    %1140 = vmatprep.mubr.bf16.mxu0 0
    %1141 = vmatmul.mubr.bf16.gmra.mxu0 %v1098
    %v1142 = vpop.f32.mrf.mxu0
    %v1143 = vadd.f32 %v1081, %v1142
    %v1144 = vpop.f32.mrf.mxu0
    %v1145 = vpop.f32.mrf.mxu0
    %v1146 = vadd.f32 %v1081, %v1145
    %v1147 = vpop.f32.mrf.mxu0
    %1148 = vdwg.mxu0
    %v1149 = vsel %vm182, %v1135, 0.0
    %v1150 = vsel %vm182, %v1138, 0.0
    %v1151 = vadd.f32 %v1149, %v1150
    %v1152 = vsel %vm182, %v1143, 0.0
    %v1153 = vadd.f32 %v1151, %v1152
    %v1154 = vsel %vm182, %v1146, 0.0
    %v1155 = vadd.f32 %v1153, %v1154
    %v1156 = vrot.slane %v1155, 4
    %v1157 = vadd.f32 %v1155, %v1156
    %v1158 = vrot.slane %v1157, 2
    %v1159 = vadd.f32 %v1157, %v1158
    %v1160 = vrot.slane %v1159, 1
    %v1161 = vadd.f32 %v1159, %v1160
    %v1162 = vmul.f32 %v1135, %v1135
    %v1163 = vmul.f32 %v1138, %v1138
    %v1164 = vmul.f32 %v1143, %v1143
    %v1165 = vmul.f32 %v1146, %v1146
    %v1166 = vsel %vm182, %v1162, 0.0
    %v1167 = vsel %vm182, %v1163, 0.0
    %v1168 = vadd.f32 %v1166, %v1167
    %v1169 = vsel %vm182, %v1164, 0.0
    %v1170 = vadd.f32 %v1168, %v1169
    %v1171 = vsel %vm182, %v1165, 0.0
    %v1172 = vadd.f32 %v1170, %v1171
    %v1173 = vrot.slane %v1172, 4
    %v1174 = vadd.f32 %v1172, %v1173
    %v1175 = vrot.slane %v1174, 2
    %v1176 = vadd.f32 %v1174, %v1175
    %v1177 = vrot.slane %v1176, 1
    %v1178 = vadd.f32 %v1176, %v1177
    %v1179 = vmul.f32 %v1161, 0.03125
    %v1180 = vmul.f32 %v1178, 0.03125
    %v1181 = vmul.f32 %v1179, %v1179
    %v1182 = vsub.f32 %v1180, %v1181
    %v1183 = vadd.f32 %v1182, 1e-05
    %v1184 = vrsqrt.pop %v1183
    %v1185 = vmul.f32 %v1184, %v1070
    %v1186 = vmul.f32 %v1179, %v1185
    %v1187 = vsub.f32 %v1071, %v1186
    %v1188 = vlaneseq
    %v1189 = vshrl.u32 %v1188, 7
    %v1190 = vsub.s32 0, %v1189
    %v1191 = vrot.slane %v1185, %v1190
    %v1192 = vmul.f32 %v1135, %v1191
    %v1193 = vmul.f32 %v1138, %v1191
    %v1194 = vmul.f32 %v1143, %v1191
    %v1195 = vmul.f32 %v1146, %v1191
    %v1196 = vlaneseq
    %v1197 = vshrl.u32 %v1196, 7
    %v1198 = vsub.s32 0, %v1197
    %v1199 = vrot.slane %v1187, %v1198
    %v1200 = vadd.f32 %v1192, %v1199
    %v1201 = vadd.f32 %v1193, %v1199
    %v1202 = vadd.f32 %v1194, %v1199
    %v1203 = vadd.f32 %v1195, %v1199
    %v1204 = vmul.f32 %v1200, 0.5
    %v1205 = vmul.f32 %v1201, 0.5
    %v1206 = vmul.f32 %v1202, 0.5
    %v1207 = vmul.f32 %v1203, 0.5
    %v1208 = vmul.f32 %v1200, 0.70710677
    %v1209 = vmul.f32 %v1201, 0.70710677
    %v1210 = vmul.f32 %v1202, 0.70710677
    %v1211 = vmul.f32 %v1203, 0.70710677
    %vm1212 = vcmp.ge.f32.partialorder %v1208, 0.0
    %vm1213 = vcmp.ge.f32.partialorder %v1209, 0.0
    %vm1214 = vcmp.ge.f32.partialorder %v1210, 0.0
    %vm1215 = vcmp.ge.f32.partialorder %v1211, 0.0
    %v1216 = vsel %vm1212, 1.0, -1.0
    %v1217 = vsel %vm1213, 1.0, -1.0
    %v1218 = vsel %vm1214, 1.0, -1.0
    %v1219 = vsel %vm1215, 1.0, -1.0
    %v1220 = vand.u32 2147483647, %v1208
    %v1221 = vand.u32 2147483647, %v1209
    %v1222 = vand.u32 2147483647, %v1210
    %v1223 = vand.u32 2147483647, %v1211
    %v1224 = vmul.f32 %v1220, 0.3275911
    %v1225 = vmul.f32 %v1221, 0.3275911
    %v1226 = vmul.f32 %v1222, 0.3275911
    %v1227 = vmul.f32 %v1223, 0.3275911
    %v1228 = vadd.f32 %v1224, 1.0
    %v1229 = vadd.f32 %v1225, 1.0
    %v1230 = vadd.f32 %v1226, 1.0
    %v1231 = vadd.f32 %v1227, 1.0
    %v1232 = vrcp.pop %v1228
    %v1233 = vrcp.pop %v1229
    %v1234 = vrcp.pop %v1230
    %v1235 = vrcp.pop %v1231
    %v1236 = vmul.f32 %v1232, 1.0614054
    %v1237 = vmul.f32 %v1233, 1.0614054
    %v1238 = vmul.f32 %v1234, 1.0614054
    %v1239 = vmul.f32 %v1235, 1.0614054
    %v1240 = vadd.f32 %v1236, -1.4531521
    %v1241 = vadd.f32 %v1237, -1.4531521
    %v1242 = vadd.f32 %v1238, -1.4531521
    %v1243 = vadd.f32 %v1239, -1.4531521
    %v1244 = vmul.f32 %v1240, %v1232
    %v1245 = vmul.f32 %v1241, %v1233
    %v1246 = vmul.f32 %v1242, %v1234
    %v1247 = vmul.f32 %v1243, %v1235
    %v1248 = vadd.f32 %v1244, 1.4214138
    %v1249 = vadd.f32 %v1245, 1.4214138
    %v1250 = vadd.f32 %v1246, 1.4214138
    %v1251 = vadd.f32 %v1247, 1.4214138
    %v1252 = vmul.f32 %v1248, %v1232
    %v1253 = vmul.f32 %v1249, %v1233
    %v1254 = vmul.f32 %v1250, %v1234
    %v1255 = vmul.f32 %v1251, %v1235
    %v1256 = vadd.f32 %v1252, -0.28449672
    %v1257 = vadd.f32 %v1253, -0.28449672
    %v1258 = vadd.f32 %v1254, -0.28449672
    %v1259 = vadd.f32 %v1255, -0.28449672
    %v1260 = vmul.f32 %v1256, %v1232
    %v1261 = vmul.f32 %v1257, %v1233
    %v1262 = vmul.f32 %v1258, %v1234
    %v1263 = vmul.f32 %v1259, %v1235
    %v1264 = vadd.f32 %v1260, 0.2548296
    %v1265 = vadd.f32 %v1261, 0.2548296
    %v1266 = vadd.f32 %v1262, 0.2548296
    %v1267 = vadd.f32 %v1263, 0.2548296
    %v1268 = vmul.f32 %v1264, %v1232
    %v1269 = vmul.f32 %v1265, %v1233
    %v1270 = vmul.f32 %v1266, %v1234
    %v1271 = vmul.f32 %v1267, %v1235
    %v1272 = vsub.f32 0.0, %v1220
    %v1273 = vsub.f32 0.0, %v1221
    %v1274 = vsub.f32 0.0, %v1222
    %v1275 = vsub.f32 0.0, %v1223
    %v1276 = vmul.f32 %v1272, %v1220
    %v1277 = vmul.f32 %v1273, %v1221
    %v1278 = vmul.f32 %v1274, %v1222
    %v1279 = vmul.f32 %v1275, %v1223
    %v1280 = vmul.f32 %v1276, 1.442695
    %v1281 = vpow.pop %v1280
    %v1282 = vmul.f32 %v1277, 1.442695
    %v1283 = vpow.pop %v1282
    %v1284 = vmul.f32 %v1278, 1.442695
    %v1285 = vpow.pop %v1284
    %v1286 = vmul.f32 %v1279, 1.442695
    %v1287 = vpow.pop %v1286
    %v1288 = vmul.f32 %v1268, %v1281
    %v1289 = vmul.f32 %v1269, %v1283
    %v1290 = vmul.f32 %v1270, %v1285
    %v1291 = vmul.f32 %v1271, %v1287
    %v1292 = vsub.f32 1.0, %v1288
    %v1293 = vsub.f32 1.0, %v1289
    %v1294 = vsub.f32 1.0, %v1290
    %v1295 = vsub.f32 1.0, %v1291
    %v1296 = vmul.f32 %v1216, %v1292
    %v1297 = vmul.f32 %v1217, %v1293
    %v1298 = vmul.f32 %v1218, %v1294
    %v1299 = vmul.f32 %v1219, %v1295
    %v1300 = vadd.f32 %v1296, 1.0
    %v1301 = vadd.f32 %v1297, 1.0
    %v1302 = vadd.f32 %v1298, 1.0
    %v1303 = vadd.f32 %v1299, 1.0
    %v1304 = vmul.f32 %v1204, %v1300
    %v1305 = vmul.f32 %v1205, %v1301
    %v1306 = vmul.f32 %v1206, %v1302
    %v1307 = vmul.f32 %v1207, %v1303
    %v1308 = vld [vmem:[#allocation8 + $0xf] sm:$0x1]
    %v1309 = vld [vmem:[#allocation8 + $0x10] sm:$0x1]
    %v1310 = vld [vmem:[#allocation8 + $0x11] sm:$0x1]
    %v1311 = vld [vmem:[%s7] sm:$0xf]
    %v1312 = vld [vmem:[%s7 + $0x4] sm:$0xf]
    %v1313 = vld [vmem:[%s7 + $0x8] sm:$0xf]
    %v1314 = vld [vmem:[%s7 + $0xc] sm:$0xf]
    %v1315 = vld [vmem:[%s7 + $0x10] sm:$0xf]
    %v1316 = vld [vmem:[%s7 + $0x14] sm:$0xf]
    %v1317 = vld [vmem:[%s7 + $0x18] sm:$0xf]
    %v1318 = vld [vmem:[%s7 + $0x1c] sm:$0xf]
    %v1319 = vpack.c.bf16 %v1305, %v1304
    %v1320 = vpack.c.bf16 %v1307, %v1306
    %v1321 = vlaneseq
    %v1322 = vshrl.u32 %v1321, 7
    %v1323 = vsub.s32 0, %v1322
    %v1324 = vrot.slane %v1308, %v1323
    %v1333 = vunpack.c.l.b16 %v1311
    %v1334 = vunpack.c.l.b16 %v1312
    %v1335 = vunpack.c.l.b16 %v1313
    %v1336 = vunpack.c.l.b16 %v1314
    %v1337 = vunpack.c.l.b16 %v1315
    %v1338 = vunpack.c.l.b16 %v1316
    %v1339 = vunpack.c.l.b16 %v1317
    %v1340 = vunpack.c.l.b16 %v1318
    %v1341 = vpack.c.b16 %v1334, %v1333
    %v1342 = vpack.c.b16 %v1336, %v1335
    %v1343 = vpack.c.b16 %v1338, %v1337
    %v1344 = vpack.c.b16 %v1340, %v1339
    %v1350 = vsel %vm182, %v1319, 0
    %v1353 = vsel %vm182, %v1320, 0
    %1355 = vmatprep.subr.bf16.mxu0 0
    %1356 = vmatpush1.bf16.msra.mxu0 0
    %1357 = vmatprep.subr.bf16.mxu0 0
    %1358 = vmatpush1.bf16.msra.mxu0 0
    %1359 = vmatprep.subr.bf16.mxu0 0
    %1360 = vmatpush1.bf16.msra.mxu0 0
    %1361 = vmatprep.subr.bf16.mxu0 0
    %1362 = vmatpush1.bf16.msra.mxu0 0
    %1363 = vmatprep.subr.bf16.mxu0 0
    %1364 = vmatpush1.bf16.msra.mxu0 %v1344
    %1365 = vmatprep.subr.bf16.mxu0 0
    %1366 = vmatpush1.bf16.msra.mxu0 %v1343
    %1367 = vmatprep.subr.bf16.mxu0 0
    %1368 = vmatpush1.bf16.msra.mxu0 %v1342
    %1369 = vmatprep.subr.bf16.mxu0 0
    %1370 = vmatpush1.bf16.msra.mxu0 %v1341
    %1371 = vmatprep.subr.bf16.mxu0 0
    %1372 = vmatpush2.bf16.msra.mxu0 0
    %1373 = vmatprep.subr.bf16.mxu0 0
    %1374 = vmatpush2.bf16.msra.mxu0 0
    %1375 = vmatprep.subr.bf16.mxu0 0
    %1376 = vmatpush2.bf16.msra.mxu0 0
    %1377 = vmatprep.subr.bf16.mxu0 0
    %1378 = vmatpush2.bf16.msra.mxu0 0
    %1379 = vmatprep.subr.bf16.mxu0 0
    %1380 = vmatpush2.bf16.msra.mxu0 0
    %1381 = vmatprep.subr.bf16.mxu0 0
    %1382 = vmatpush2.bf16.msra.mxu0 0
    %1383 = vmatprep.subr.bf16.mxu0 0
    %1384 = vmatpush2.bf16.msra.mxu0 0
    %1385 = vmatprep.subr.bf16.mxu0 0
    %1386 = vmatpush2.bf16.msra.mxu0 0
    %1387 = vmatprep.mubr.bf16.mxu0 0
    %1388 = vmatmul.mubr.bf16.gmra.mxu0 %v1350
    %v1389 = vpop.f32.mrf.mxu0
    %v1390 = vadd.f32 %v1324, %v1389
    %v1391 = vpop.f32.mrf.mxu0
    %v1392 = vpop.f32.mrf.mxu0
    %v1393 = vadd.f32 %v1324, %v1392
    %v1394 = vpop.f32.mrf.mxu0
    %1395 = vmatprep.mubr.bf16.mxu0 0
    %1396 = vmatmul.mubr.bf16.gmra.mxu0 %v1353
    %v1397 = vpop.f32.mrf.mxu0
    %v1398 = vadd.f32 %v1324, %v1397
    %v1399 = vpop.f32.mrf.mxu0
    %v1400 = vpop.f32.mrf.mxu0
    %v1401 = vadd.f32 %v1324, %v1400
    %v1402 = vpop.f32.mrf.mxu0
    %1403 = vdwg.mxu0
    %v1404 = vadd.f32 %v1390, %v1393
    %v1405 = vadd.f32 %v1404, %v1398
    %v1406 = vadd.f32 %v1405, %v1401
    %v1407 = vrot.slane %v1406, 4
    %v1408 = vadd.f32 %v1406, %v1407
    %v1409 = vrot.slane %v1408, 2
    %v1410 = vadd.f32 %v1408, %v1409
    %v1411 = vrot.slane %v1410, 1
    %v1412 = vadd.f32 %v1410, %v1411
    %v1413 = vmul.f32 %v1390, %v1390
    %v1414 = vmul.f32 %v1393, %v1393
    %v1415 = vmul.f32 %v1398, %v1398
    %v1416 = vmul.f32 %v1401, %v1401
    %v1417 = vadd.f32 %v1413, %v1414
    %v1418 = vadd.f32 %v1417, %v1415
    %v1419 = vadd.f32 %v1418, %v1416
    %v1420 = vrot.slane %v1419, 4
    %v1421 = vadd.f32 %v1419, %v1420
    %v1422 = vrot.slane %v1421, 2
    %v1423 = vadd.f32 %v1421, %v1422
    %v1424 = vrot.slane %v1423, 1
    %v1425 = vadd.f32 %v1423, %v1424
    %v1426 = vmul.f32 %v1412, 0.03125
    %v1427 = vmul.f32 %v1425, 0.03125
    %v1428 = vmul.f32 %v1426, %v1426
    %v1429 = vsub.f32 %v1427, %v1428
    %v1430 = vadd.f32 %v1429, 1e-05
    %v1431 = vrsqrt.pop %v1430
    %v1432 = vmul.f32 %v1431, %v1309
    %v1433 = vmul.f32 %v1426, %v1432
    %v1434 = vsub.f32 %v1310, %v1433
    %v1435 = vlaneseq
    %v1436 = vshrl.u32 %v1435, 7
    %v1437 = vsub.s32 0, %v1436
    %v1438 = vrot.slane %v1432, %v1437
    %v1439 = vmul.f32 %v1390, %v1438
    %v1440 = vmul.f32 %v1393, %v1438
    %v1441 = vmul.f32 %v1398, %v1438
    %v1442 = vmul.f32 %v1401, %v1438
    %v1443 = vlaneseq
    %v1444 = vshrl.u32 %v1443, 7
    %v1445 = vsub.s32 0, %v1444
    %v1446 = vrot.slane %v1434, %v1445
    %v1447 = vadd.f32 %v1439, %v1446
    %v1448 = vadd.f32 %v1440, %v1446
    %v1449 = vadd.f32 %v1441, %v1446
    %v1450 = vadd.f32 %v1442, %v1446
    %v1451 = vld [vmem:[#allocation2] sm:$0xff]
    %v1452 = vld [vmem:[#allocation2 + $0x8] sm:$0xff]
    %v1453 = vadd.f32 %v1447, %v1451
    %v1454 = vadd.f32 %v1448, %v1452
    %v1455 = vadd.f32 %v1449, %v1451
    %v1456 = vadd.f32 %v1450, %v1452
    %1457 = vst [vmem:[#allocation10] sm:$0xff] %v1453
    %1458 = vst [vmem:[#allocation10 + $0x8] sm:$0xff] %v1454
    %1459 = vst [vmem:[#allocation10 + $0x10] sm:$0xff] %v1455
    %1460 = vst [vmem:[#allocation10 + $0x18] sm:$0xff] %v1456
    // Predicated region
    $region54: #{tpu_custom_call.1} parent=1 // pred_check
      _
    $region55: #{tpu_custom_call.1} parent=1 // pred_check_branch
      %1462 = sbr.rel (0) target = $region57
    $region56: #{tpu_custom_call.1} parent=1 // pred_region
      %s1464 = ssub.s32 512, 512
      %1465 = vsyncadd [#allocation4], %s1464
      %s1466 = sshll.u32 [#allocation10], 4
      %s1467 = int_to_ptr.vmem [resolvable:$true] %s1466
      %1472 = dma.vmem_to_hbm [thread:$0]  %s1467, 512, %s9, [#allocation4], 128, 128, 8
    $region57: #{tpu_custom_call.1} parent=1 // pred_fallthru
      _
    // Predicated region
    $region58: #{tpu_custom_call.1} parent=1 // pred_check
      _
    $region59: #{tpu_custom_call.1} parent=1 // pred_check_branch
      %1474 = sbr.rel (0) target = $region61
    $region60: #{tpu_custom_call.1} parent=1 // pred_region
      %1475 = dma.done [#allocation4], 512
    $region61: #{tpu_custom_call.1} parent=1 // pred_fallthru
      _
    %1476 = vsyncpa [#allocation3], 1
    %1477 = vsyncpa [#allocation6], 1
    %1478 = vsyncpa [#allocation9], 1
    %1479 = vsyncpa [#allocation4], 1

</llo_original>
